<compile_context>
chip_gen: v7x
topology: tpu7x:2x2x1
jax: 0.10.0
libtpu: 0.0.40
codegen_flags: <defaults>
</compile_context>

<pallas_src>
import functools
import math

import jax
import jax.numpy as jnp
from jax.experimental import pallas as pl
from jax.experimental.pallas import tpu as pltpu

BF16 = jnp.bfloat16


# ---------------------------------------------------------------------------
# Shared math helpers (used by both the kernel and the pure-JAX reference).
# ---------------------------------------------------------------------------
def _layernorm(x, gamma, beta, eps=1e-5):
    """LayerNorm with one-pass statistics (mu, E[x^2] - mu^2)."""
    x = x.astype(jnp.float32)
    mu = jnp.mean(x, axis=-1, keepdims=True)
    var = jnp.maximum(jnp.mean(x * x, axis=-1, keepdims=True) - mu * mu, 0.0)
    return (x - mu) * jax.lax.rsqrt(var + eps) * gamma + beta


def _quick_gelu(x):
    # x * sigmoid(1.702 * x)
    return x * (1.0 / (1.0 + jnp.exp(-1.702 * x)))


# ---------------------------------------------------------------------------
# Kernel: grid = (batch tiles ["parallel"], layers ["arbitrary"]).
# Weights arrive as one layer's slice per step; the residual lives in res_ref.
# ---------------------------------------------------------------------------
def cross_attention_kernel(
    x_ref, y_ref,
    lnx_g_ref, lnx_b_ref, lny_g_ref, lny_b_ref,
    wq_ref, bq_ref, wk_ref, bk_ref, wv_ref, bv_ref,
    ln2_g_ref, ln2_b_ref, wfc_ref, bfc_ref, wpr_ref, bpr_ref,
    o_ref, res_ref, *, n_heads, seq_len):
    layer = pl.program_id(1)
    n_layers = pl.num_programs(1)
    tb, Lp, D = x_ref.shape
    dk = D // n_heads
    scale = 1.0 / math.sqrt(dk)
    M = tb * Lp

    # First layer step for this batch tile: load the residual stream into f32 scratch.
    @pl.when(layer == 0)
    def _():
        res_ref[...] = x_ref[...].astype(jnp.float32)

    x = res_ref[...]                                         # (tb, Lp, D) f32 residual
    y2 = y_ref[...].astype(jnp.float32).reshape(M, D)        # y is re-LayerNormed per layer

    # ---- cross attention: q from LN(y), k/v from LN(x) ----
    xn_bf = _layernorm(x.reshape(M, D), lnx_g_ref[0], lnx_b_ref[0]).astype(BF16)
    yn_bf = _layernorm(y2, lny_g_ref[0], lny_b_ref[0]).astype(BF16)

    q = jnp.dot(yn_bf, wq_ref[0], preferred_element_type=jnp.float32) + bq_ref[0]
    k = jnp.dot(xn_bf, wk_ref[0], preferred_element_type=jnp.float32) + bk_ref[0]
    v = jnp.dot(xn_bf, wv_ref[0], preferred_element_type=jnp.float32) + bv_ref[0]

    # Scale folded into q; bf16 casts hoisted out of the head loop.
    q_bf = (q * scale).astype(BF16).reshape(tb, Lp, D)
    k_bf = k.astype(BF16).reshape(tb, Lp, D)
    v_bf = v.astype(BF16).reshape(tb, Lp, D)

    key_mask = None
    if seq_len < Lp:  # padded key positions must not receive attention mass
        key_mask = jax.lax.broadcasted_iota(jnp.int32, (1, 1, Lp), 2) < seq_len

    heads = []
    for h in range(n_heads):
        sl = slice(h * dk, (h + 1) * dk)
        s = jnp.einsum('bqd,bkd->bqk', q_bf[:, :, sl], k_bf[:, :, sl],
                       preferred_element_type=jnp.float32)
        if key_mask is not None:
            s = jnp.where(key_mask, s, -1e30)
        s = s - jnp.max(s, axis=-1, keepdims=True)
        p = jnp.exp(s)
        p = p * pl.reciprocal(jnp.sum(p, axis=-1, keepdims=True), approx=True)
        heads.append(jnp.einsum('bqk,bkd->bqd', p.astype(BF16), v_bf[:, :, sl],
                                preferred_element_type=jnp.float32))
    x = x + jnp.concatenate(heads, axis=-1)

    # ---- MLP: c_fc -> QuickGELU -> c_proj ----
    xn2_bf = _layernorm(x.reshape(M, D), ln2_g_ref[0], ln2_b_ref[0]).astype(BF16)
    hmid = jnp.dot(xn2_bf, wfc_ref[0], preferred_element_type=jnp.float32) + bfc_ref[0]
    hmid = _quick_gelu(hmid)
    mlp = jnp.dot(hmid.astype(BF16), wpr_ref[0], preferred_element_type=jnp.float32) + bpr_ref[0]
    x = x + mlp.reshape(tb, Lp, D)

    res_ref[...] = x

    @pl.when(layer == n_layers - 1)
    def _():
        o_ref[...] = x.astype(o_ref.dtype)


# ---------------------------------------------------------------------------
# Wrapper
# ---------------------------------------------------------------------------
_PARAM_ORDER = ("lnx_g", "lnx_b", "lny_g", "lny_b",
                "wq", "bq", "wk", "bk", "wv", "bv",
                "ln2_g", "ln2_b", "wfc", "bfc", "wpr", "bpr")


def _vmem_capacity_bytes():
    try:
        return int(pltpu.get_tpu_info().vmem_capacity_bytes)
    except Exception:
        return 128 << 20  # conservative fallback (v5e/v6e physical)


def _temp_bytes_per_batch_row(Lp, D, d_ff, n_heads):
    # Dominant f32 in-kernel temporaries per batch row per layer step:
    # ~a dozen D-wide tensors (x, y, xn/yn, q/k/v + bf16 copies, attn, mlp),
    # the (Lp, d_ff) hmid (+ bf16 copy), and the per-head (Lp, Lp) score/prob matrices.
    return 4 * Lp * (12 * D + 2 * d_ff + 2 * n_heads * Lp)


def _pick_tile_b(B, Lp, D, d_ff, n_heads, vmem_cap, layer_weight_bytes):
    per_b = _temp_bytes_per_batch_row(Lp, D, d_ff, n_heads) + 8 * Lp * D  # + act tiles/scratch
    budget = int(0.6 * vmem_cap) - 2 * layer_weight_bytes - (4 << 20)
    cap = max(1, budget // per_b) if budget > per_b else 1
    cap = min(cap, B)
    if B > 1:
        cap = min(cap, B // 2)  # keep >= 2 batch grid steps so both v7x TensorCores get work
    # Largest divisor of B under the cap maximizes M = tile_b * Lp (MXU row fill); bigger
    # batch tiles are nearly free bandwidth-wise since weight traffic dominates.
    for t in range(cap, 0, -1):
        if B % t == 0:
            return t
    return 1


def cross_attention(x, y, params, *, n_heads, tile_b=None):
    """x, y: [B, L, d_model]. params: dict of layer-stacked weights (see init_params)."""
    B, L, D = x.shape
    assert y.shape == (B, L, D), "residual x + attn(q from y) requires matching shapes"
    assert D % n_heads == 0
    n_layers = params["wq"].shape[0]
    d_ff = params["wfc"].shape[-1]

    # Pad L to a multiple of 8 (dense sublane tiles, free (tb,L,D)<->(tb*L,D) reshapes);
    # padded key positions are masked inside the kernel, padding sliced off afterwards.
    Lp = max(8, ((L + 7) // 8) * 8)
    xp, yp = x, y
    if Lp != L:
        pad = ((0, 0), (0, Lp - L), (0, 0))
        xp = jnp.pad(x, pad)
        yp = jnp.pad(y, pad)

    param_vals = [params[k] for k in _PARAM_ORDER]
    weight_bytes_total = sum(int(p.size) * p.dtype.itemsize for p in param_vals)
    layer_weight_bytes = weight_bytes_total // n_layers

    vmem_cap = _vmem_capacity_bytes()
    if tile_b is None:
        tile_b = _pick_tile_b(B, Lp, D, d_ff, n_heads, vmem_cap, layer_weight_bytes)
    assert B % tile_b == 0
    num_b_tiles = B // tile_b
    grid = (num_b_tiles, n_layers)

    act_spec = pl.BlockSpec((tile_b, Lp, D), lambda b, l: (b, 0, 0))
    weight_spec = lambda p: pl.BlockSpec((1,) + p.shape[1:], lambda b, l: (l, 0, 0))

    # Advisory cost model for XLA scheduling around the custom call.
    flops = 2 * B * n_layers * Lp * (3 * D * D + 2 * Lp * D + 2 * D * d_ff)
    transc = B * n_layers * Lp * (n_heads * Lp + d_ff)
    bytes_acc = (xp.size + yp.size + B * Lp * D) * 4 + num_b_tiles * weight_bytes_total
    cost = pl.CostEstimate(flops=int(flops), transcendentals=int(transc),
                           bytes_accessed=int(bytes_acc))

    # VMEM budget: one layer's weights (double-buffered stream), x/y/out activation tiles
    # (double-buffered), the residual scratch, and f32 temporaries.
    act_tile_bytes = tile_b * Lp * D * 4
    temp_bytes = tile_b * _temp_bytes_per_batch_row(Lp, D, d_ff, n_heads)
    needed = 2 * layer_weight_bytes + 7 * act_tile_bytes + temp_bytes
    # Generation-aware cap: leave headroom on v7x (64 MiB physical), allow more on v5e/v6e.
    hard_cap = (56 << 20) if vmem_cap <= (64 << 20) else min(100 << 20, vmem_cap - (16 << 20))
    vmem_limit_bytes = int(min(max(needed + (8 << 20), 32 << 20), hard_cap))

    kernel = functools.partial(cross_attention_kernel, n_heads=n_heads, seq_len=L)

    out = pl.pallas_call(
        kernel,
        out_shape=jax.ShapeDtypeStruct((B, Lp, D), x.dtype),
        grid_spec=pltpu.PrefetchScalarGridSpec(
            num_scalar_prefetch=0,
            grid=grid,
            in_specs=[act_spec, act_spec] + [weight_spec(p) for p in param_vals],
            out_specs=act_spec,
            scratch_shapes=[pltpu.VMEM((tile_b, Lp, D), jnp.float32)],
        ),
        compiler_params=pltpu.CompilerParams(
            dimension_semantics=("parallel", "arbitrary"),
            vmem_limit_bytes=vmem_limit_bytes),
        cost_estimate=cost,
    )(xp, yp, *param_vals)

    return out[:, :L, :] if Lp != L else out


# ---------------------------------------------------------------------------
# Parameters & pure-JAX reference
# ---------------------------------------------------------------------------
def init_params(key, d_model, n_layers, *, mlp_ratio=4, weight_dtype=jnp.bfloat16):
    """Synthetic per-layer params; PyTorch Linear weights pre-transposed to (in, out).

    Matmul weights are stored in bf16 (MXU operands); biases / LayerNorm params stay f32.
    (The PyTorch module clones identical initial weights; distinct random weights are used
    here to exercise the per-layer streaming path.)
    """
    d_ff = d_model * mlp_ratio
    ks = iter(jax.random.split(key, 16 * n_layers + 1))

    def stack(make):
        return jnp.stack([make(next(ks)) for _ in range(n_layers)], axis=0)

    w = lambda i, o: (lambda k: (0.02 * jax.random.normal(k, (i, o), jnp.float32)).astype(weight_dtype))
    b = lambda o: (lambda k: 0.02 * jax.random.normal(k, (1, o), jnp.float32))
    g = lambda o: (lambda k: 1.0 + 0.1 * jax.random.normal(k, (1, o), jnp.float32))

    return dict(
        lnx_g=stack(g(d_model)), lnx_b=stack(b(d_model)),
        lny_g=stack(g(d_model)), lny_b=stack(b(d_model)),
        wq=stack(w(d_model, d_model)), bq=stack(b(d_model)),
        wk=stack(w(d_model, d_model)), bk=stack(b(d_model)),
        wv=stack(w(d_model, d_model)), bv=stack(b(d_model)),
        ln2_g=stack(g(d_model)), ln2_b=stack(b(d_model)),
        wfc=stack(w(d_model, d_ff)), bfc=stack(b(d_ff)),
        wpr=stack(w(d_ff, d_model)), bpr=stack(b(d_model)),
    )


def reference(x, y, params, n_heads):
    """Pure-JAX forward mirroring the kernel's bf16-operand / f32-accumulate contract."""
    n_layers = params["wq"].shape[0]
    B, L, D = x.shape
    dk = D // n_heads
    scale = 1.0 / math.sqrt(dk)

    def lin(a, w, bias):
        return jnp.einsum('bld,df->blf', a.astype(BF16), w.astype(BF16),
                          preferred_element_type=jnp.float32) + bias

    x = x.astype(jnp.float32)
    y = y.astype(jnp.float32)
    for l in range(n_layers):
        xn = _layernorm(x, params["lnx_g"][l], params["lnx_b"][l])
        yn = _layernorm(y, params["lny_g"][l], params["lny_b"][l])
        q = (lin(yn, params["wq"][l], params["bq"][l]) * scale).astype(BF16)
        k = lin(xn, params["wk"][l], params["bk"][l]).astype(BF16)
        v = lin(xn, params["wv"][l], params["bv"][l]).astype(BF16)
        heads = []
        for h in range(n_heads):
            sl = slice(h * dk, (h + 1) * dk)
            s = jnp.einsum('bqd,bkd->bqk', q[..., sl], k[..., sl],
                           preferred_element_type=jnp.float32)
            s = s - jnp.max(s, axis=-1, keepdims=True)
            p = jnp.exp(s)
            p = p / jnp.sum(p, axis=-1, keepdims=True)
            heads.append(jnp.einsum('bqk,bkd->bqd', p.astype(BF16), v[..., sl],
                                    preferred_element_type=jnp.float32))
        x = x + jnp.concatenate(heads, axis=-1)

        xn2 = _layernorm(x, params["ln2_g"][l], params["ln2_b"][l])
        hmid = _quick_gelu(lin(xn2, params["wfc"][l], params["bfc"][l]))
        x = x + lin(hmid, params["wpr"][l], params["bpr"][l])
    return x


if __name__ == "__main__":
    # Small shapes consistent with the module: clip_feature_dim=32, n_heads=4, n_layers=2.
    B, L, D, H, N_LAYERS = 2, 8, 32, 4, 2

    key = jax.random.PRNGKey(0)
    kx, ky, kp = jax.random.split(key, 3)
    x = jax.random.normal(kx, (B, L, D), jnp.float32)
    y = jax.random.normal(ky, (B, L, D), jnp.float32)
    params = init_params(kp, D, N_LAYERS)

    out = jax.block_until_ready(cross_attention(x, y, params, n_heads=H))
    ref = jax.block_until_ready(reference(x, y, params, H))

    assert out.shape == (B, L, D)
    max_err = float(jnp.max(jnp.abs(out - ref)))
    assert max_err < 5e-3, f"max abs err {max_err}"

    print("KERNEL_OK")
</pallas_src>

<mosaic_0001>
module attributes {stable_mosaic.version = 11 : i64} {
  func.func @cross_attention_kernel(%arg0: i32, %arg1: i32, %arg2: memref<1x8x32xf32, #tpu.memory_space<vmem>>, %arg3: memref<1x8x32xf32, #tpu.memory_space<vmem>>, %arg4: memref<1x1x32xf32, #tpu.memory_space<vmem>>, %arg5: memref<1x1x32xf32, #tpu.memory_space<vmem>>, %arg6: memref<1x1x32xf32, #tpu.memory_space<vmem>>, %arg7: memref<1x1x32xf32, #tpu.memory_space<vmem>>, %arg8: memref<1x32x32xbf16, #tpu.memory_space<vmem>>, %arg9: memref<1x1x32xf32, #tpu.memory_space<vmem>>, %arg10: memref<1x32x32xbf16, #tpu.memory_space<vmem>>, %arg11: memref<1x1x32xf32, #tpu.memory_space<vmem>>, %arg12: memref<1x32x32xbf16, #tpu.memory_space<vmem>>, %arg13: memref<1x1x32xf32, #tpu.memory_space<vmem>>, %arg14: memref<1x1x32xf32, #tpu.memory_space<vmem>>, %arg15: memref<1x1x32xf32, #tpu.memory_space<vmem>>, %arg16: memref<1x32x128xbf16, #tpu.memory_space<vmem>>, %arg17: memref<1x1x128xf32, #tpu.memory_space<vmem>>, %arg18: memref<1x128x32xbf16, #tpu.memory_space<vmem>>, %arg19: memref<1x1x32xf32, #tpu.memory_space<vmem>>, %arg20: memref<1x8x32xf32, #tpu.memory_space<vmem>>, %arg21: memref<1x8x32xf32, #tpu.memory_space<vmem>>) attributes {dimension_semantics = [#tpu.dimension_semantics<parallel>, #tpu.dimension_semantics<arbitrary>], iteration_bounds = array<i64: 2, 2>, scalar_prefetch = 0 : i64, scratch_operands = 1 : i64, tpu.core_type = #tpu.core_type<tc>, window_params = [{transform_indices = @transform_0, window_bounds = array<i64: 1, 8, 32>}, {transform_indices = @transform_1, window_bounds = array<i64: 1, 8, 32>}, {transform_indices = @transform_2, window_bounds = array<i64: 1, 1, 32>}, {transform_indices = @transform_3, window_bounds = array<i64: 1, 1, 32>}, {transform_indices = @transform_4, window_bounds = array<i64: 1, 1, 32>}, {transform_indices = @transform_5, window_bounds = array<i64: 1, 1, 32>}, {transform_indices = @transform_6, window_bounds = array<i64: 1, 32, 32>}, {transform_indices = @transform_7, window_bounds = array<i64: 1, 1, 32>}, {transform_indices = @transform_8, window_bounds = array<i64: 1, 32, 32>}, {transform_indices = @transform_9, window_bounds = array<i64: 1, 1, 32>}, {transform_indices = @transform_10, window_bounds = array<i64: 1, 32, 32>}, {transform_indices = @transform_11, window_bounds = array<i64: 1, 1, 32>}, {transform_indices = @transform_12, window_bounds = array<i64: 1, 1, 32>}, {transform_indices = @transform_13, window_bounds = array<i64: 1, 1, 32>}, {transform_indices = @transform_14, window_bounds = array<i64: 1, 32, 128>}, {transform_indices = @transform_15, window_bounds = array<i64: 1, 1, 128>}, {transform_indices = @transform_16, window_bounds = array<i64: 1, 128, 32>}, {transform_indices = @transform_17, window_bounds = array<i64: 1, 1, 32>}, {transform_indices = @transform_18, window_bounds = array<i64: 1, 8, 32>}]} {
    %c0_i32 = arith.constant 0 : i32
    %0 = arith.cmpi eq, %arg1, %c0_i32 : i32
    %1 = arith.extui %0 : i1 to i32
    %c0_i32_0 = arith.constant 0 : i32
    %2 = arith.cmpi ne, %1, %c0_i32_0 : i32
    scf.if %2 {
      %c0_100 = arith.constant 0 : index
      %c0_101 = arith.constant 0 : index
      %c0_102 = arith.constant 0 : index
      %219 = vector.load %arg2[%c0_100, %c0_101, %c0_102] : memref<1x8x32xf32, #tpu.memory_space<vmem>>, vector<1x8x32xf32>
      %c0_103 = arith.constant 0 : index
      %c0_104 = arith.constant 0 : index
      %c0_105 = arith.constant 0 : index
      %220 = vector.load %arg21[%c0_103, %c0_104, %c0_105] : memref<1x8x32xf32, #tpu.memory_space<vmem>>, vector<1x8x32xf32>
      tpu.vector_store %arg21[%c0_103, %c0_104, %c0_105], %219 {strides = array<i32>} : memref<1x8x32xf32, #tpu.memory_space<vmem>>, vector<1x8x32xf32>,
    } else {
    }
    %c0 = arith.constant 0 : index
    %c0_1 = arith.constant 0 : index
    %c0_2 = arith.constant 0 : index
    %3 = vector.load %arg21[%c0, %c0_1, %c0_2] : memref<1x8x32xf32, #tpu.memory_space<vmem>>, vector<1x8x32xf32>
    %c0_3 = arith.constant 0 : index
    %c0_4 = arith.constant 0 : index
    %c0_5 = arith.constant 0 : index
    %4 = vector.load %arg3[%c0_3, %c0_4, %c0_5] : memref<1x8x32xf32, #tpu.memory_space<vmem>>, vector<1x8x32xf32>
    %5 = vector.shape_cast %4 : vector<1x8x32xf32> to vector<8x32xf32>
    %6 = vector.shape_cast %3 : vector<1x8x32xf32> to vector<8x32xf32>
    %c0_6 = arith.constant 0 : index
    %c0_7 = arith.constant 0 : index
    %c0_8 = arith.constant 0 : index
    %7 = vector.load %arg4[%c0_6, %c0_7, %c0_8] : memref<1x1x32xf32, #tpu.memory_space<vmem>>, vector<1x1x32xf32>
    %8 = vector.shape_cast %7 : vector<1x1x32xf32> to vector<1x32xf32>
    %c0_9 = arith.constant 0 : index
    %c0_10 = arith.constant 0 : index
    %c0_11 = arith.constant 0 : index
    %9 = vector.load %arg5[%c0_9, %c0_10, %c0_11] : memref<1x1x32xf32, #tpu.memory_space<vmem>>, vector<1x1x32xf32>
    %10 = vector.shape_cast %9 : vector<1x1x32xf32> to vector<1x32xf32>
    %cst = arith.constant dense<0.000000e+00> : vector<8xf32>
    %11 = vector.multi_reduction <add>, %6, %cst [1] : vector<8x32xf32> to vector<8xf32>
    %12 = vector.shape_cast %11 : vector<8xf32> to vector<8x1xf32>
    %cst_12 = arith.constant 3.200000e+01 : f32
    %13 = vector.broadcast %cst_12 : f32 to vector<8x1xf32>
    %14 = arith.divf %12, %13 : vector<8x1xf32>
    %15 = arith.mulf %6, %6 : vector<8x32xf32>
    %cst_13 = arith.constant dense<0.000000e+00> : vector<8xf32>
    %16 = vector.multi_reduction <add>, %15, %cst_13 [1] : vector<8x32xf32> to vector<8xf32>
    %17 = vector.shape_cast %16 : vector<8xf32> to vector<8x1xf32>
    %cst_14 = arith.constant 3.200000e+01 : f32
    %18 = vector.broadcast %cst_14 : f32 to vector<8x1xf32>
    %19 = arith.divf %17, %18 : vector<8x1xf32>
    %20 = arith.mulf %14, %14 : vector<8x1xf32>
    %21 = arith.subf %19, %20 : vector<8x1xf32>
    %cst_15 = arith.constant 0.000000e+00 : f32
    %22 = vector.broadcast %cst_15 : f32 to vector<8x1xf32>
    %23 = arith.maximumf %21, %22 : vector<8x1xf32>
    %24 = vector.broadcast %14 : vector<8x1xf32> to vector<8x32xf32>
    %25 = arith.subf %6, %24 : vector<8x32xf32>
    %cst_16 = arith.constant 9.99999974E-6 : f32
    %26 = vector.broadcast %cst_16 : f32 to vector<8x1xf32>
    %27 = arith.addf %23, %26 : vector<8x1xf32>
    %28 = math.rsqrt %27 : vector<8x1xf32>
    %29 = vector.broadcast %28 : vector<8x1xf32> to vector<8x32xf32>
    %30 = arith.mulf %25, %29 : vector<8x32xf32>
    %31 = vector.broadcast %8 : vector<1x32xf32> to vector<8x32xf32>
    %32 = arith.mulf %30, %31 : vector<8x32xf32>
    %33 = vector.broadcast %10 : vector<1x32xf32> to vector<8x32xf32>
    %34 = arith.addf %32, %33 : vector<8x32xf32>
    %35 = arith.truncf %34 : vector<8x32xf32> to vector<8x32xbf16>
    %c0_17 = arith.constant 0 : index
    %c0_18 = arith.constant 0 : index
    %c0_19 = arith.constant 0 : index
    %36 = vector.load %arg6[%c0_17, %c0_18, %c0_19] : memref<1x1x32xf32, #tpu.memory_space<vmem>>, vector<1x1x32xf32>
    %37 = vector.shape_cast %36 : vector<1x1x32xf32> to vector<1x32xf32>
    %c0_20 = arith.constant 0 : index
    %c0_21 = arith.constant 0 : index
    %c0_22 = arith.constant 0 : index
    %38 = vector.load %arg7[%c0_20, %c0_21, %c0_22] : memref<1x1x32xf32, #tpu.memory_space<vmem>>, vector<1x1x32xf32>
    %39 = vector.shape_cast %38 : vector<1x1x32xf32> to vector<1x32xf32>
    %cst_23 = arith.constant dense<0.000000e+00> : vector<8xf32>
    %40 = vector.multi_reduction <add>, %5, %cst_23 [1] : vector<8x32xf32> to vector<8xf32>
    %41 = vector.shape_cast %40 : vector<8xf32> to vector<8x1xf32>
    %cst_24 = arith.constant 3.200000e+01 : f32
    %42 = vector.broadcast %cst_24 : f32 to vector<8x1xf32>
    %43 = arith.divf %41, %42 : vector<8x1xf32>
    %44 = arith.mulf %5, %5 : vector<8x32xf32>
    %cst_25 = arith.constant dense<0.000000e+00> : vector<8xf32>
    %45 = vector.multi_reduction <add>, %44, %cst_25 [1] : vector<8x32xf32> to vector<8xf32>
    %46 = vector.shape_cast %45 : vector<8xf32> to vector<8x1xf32>
    %cst_26 = arith.constant 3.200000e+01 : f32
    %47 = vector.broadcast %cst_26 : f32 to vector<8x1xf32>
    %48 = arith.divf %46, %47 : vector<8x1xf32>
    %49 = arith.mulf %43, %43 : vector<8x1xf32>
    %50 = arith.subf %48, %49 : vector<8x1xf32>
    %cst_27 = arith.constant 0.000000e+00 : f32
    %51 = vector.broadcast %cst_27 : f32 to vector<8x1xf32>
    %52 = arith.maximumf %50, %51 : vector<8x1xf32>
    %53 = vector.broadcast %43 : vector<8x1xf32> to vector<8x32xf32>
    %54 = arith.subf %5, %53 : vector<8x32xf32>
    %cst_28 = arith.constant 9.99999974E-6 : f32
    %55 = vector.broadcast %cst_28 : f32 to vector<8x1xf32>
    %56 = arith.addf %52, %55 : vector<8x1xf32>
    %57 = math.rsqrt %56 : vector<8x1xf32>
    %58 = vector.broadcast %57 : vector<8x1xf32> to vector<8x32xf32>
    %59 = arith.mulf %54, %58 : vector<8x32xf32>
    %60 = vector.broadcast %37 : vector<1x32xf32> to vector<8x32xf32>
    %61 = arith.mulf %59, %60 : vector<8x32xf32>
    %62 = vector.broadcast %39 : vector<1x32xf32> to vector<8x32xf32>
    %63 = arith.addf %61, %62 : vector<8x32xf32>
    %64 = arith.truncf %63 : vector<8x32xf32> to vector<8x32xbf16>
    %c0_29 = arith.constant 0 : index
    %c0_30 = arith.constant 0 : index
    %c0_31 = arith.constant 0 : index
    %65 = vector.load %arg8[%c0_29, %c0_30, %c0_31] : memref<1x32x32xbf16, #tpu.memory_space<vmem>>, vector<1x32x32xbf16>
    %66 = vector.shape_cast %65 : vector<1x32x32xbf16> to vector<32x32xbf16>
    %cst_32 = arith.constant dense<0.000000e+00> : vector<8x32xf32>
    %67 = tpu.matmul %64, %66, %cst_32 {dimension_numbers = #tpu.dot_dimension_numbers<[1], [0], [0], [1], [0, 0, 1, 1], [], []>} : vector<8x32xbf16>, vector<32x32xbf16>, vector<8x32xf32> -> vector<8x32xf32>
    %c0_33 = arith.constant 0 : index
    %c0_34 = arith.constant 0 : index
    %c0_35 = arith.constant 0 : index
    %68 = vector.load %arg9[%c0_33, %c0_34, %c0_35] : memref<1x1x32xf32, #tpu.memory_space<vmem>>, vector<1x1x32xf32>
    %69 = vector.shape_cast %68 : vector<1x1x32xf32> to vector<1x32xf32>
    %70 = vector.broadcast %69 : vector<1x32xf32> to vector<8x32xf32>
    %71 = arith.addf %67, %70 : vector<8x32xf32>
    %c0_36 = arith.constant 0 : index
    %c0_37 = arith.constant 0 : index
    %c0_38 = arith.constant 0 : index
    %72 = vector.load %arg10[%c0_36, %c0_37, %c0_38] : memref<1x32x32xbf16, #tpu.memory_space<vmem>>, vector<1x32x32xbf16>
    %73 = vector.shape_cast %72 : vector<1x32x32xbf16> to vector<32x32xbf16>
    %cst_39 = arith.constant dense<0.000000e+00> : vector<8x32xf32>
    %74 = tpu.matmul %35, %73, %cst_39 {dimension_numbers = #tpu.dot_dimension_numbers<[1], [0], [0], [1], [0, 0, 1, 1], [], []>} : vector<8x32xbf16>, vector<32x32xbf16>, vector<8x32xf32> -> vector<8x32xf32>
    %c0_40 = arith.constant 0 : index
    %c0_41 = arith.constant 0 : index
    %c0_42 = arith.constant 0 : index
    %75 = vector.load %arg11[%c0_40, %c0_41, %c0_42] : memref<1x1x32xf32, #tpu.memory_space<vmem>>, vector<1x1x32xf32>
    %76 = vector.shape_cast %75 : vector<1x1x32xf32> to vector<1x32xf32>
    %77 = vector.broadcast %76 : vector<1x32xf32> to vector<8x32xf32>
    %78 = arith.addf %74, %77 : vector<8x32xf32>
    %c0_43 = arith.constant 0 : index
    %c0_44 = arith.constant 0 : index
    %c0_45 = arith.constant 0 : index
    %79 = vector.load %arg12[%c0_43, %c0_44, %c0_45] : memref<1x32x32xbf16, #tpu.memory_space<vmem>>, vector<1x32x32xbf16>
    %80 = vector.shape_cast %79 : vector<1x32x32xbf16> to vector<32x32xbf16>
    %cst_46 = arith.constant dense<0.000000e+00> : vector<8x32xf32>
    %81 = tpu.matmul %35, %80, %cst_46 {dimension_numbers = #tpu.dot_dimension_numbers<[1], [0], [0], [1], [0, 0, 1, 1], [], []>} : vector<8x32xbf16>, vector<32x32xbf16>, vector<8x32xf32> -> vector<8x32xf32>
    %c0_47 = arith.constant 0 : index
    %c0_48 = arith.constant 0 : index
    %c0_49 = arith.constant 0 : index
    %82 = vector.load %arg13[%c0_47, %c0_48, %c0_49] : memref<1x1x32xf32, #tpu.memory_space<vmem>>, vector<1x1x32xf32>
    %83 = vector.shape_cast %82 : vector<1x1x32xf32> to vector<1x32xf32>
    %84 = vector.broadcast %83 : vector<1x32xf32> to vector<8x32xf32>
    %85 = arith.addf %81, %84 : vector<8x32xf32>
    %cst_50 = arith.constant 0.353553385 : f32
    %86 = vector.broadcast %cst_50 : f32 to vector<8x32xf32>
    %87 = arith.mulf %71, %86 : vector<8x32xf32>
    %88 = arith.truncf %87 : vector<8x32xf32> to vector<8x32xbf16>
    %89 = vector.shape_cast %88 : vector<8x32xbf16> to vector<1x8x32xbf16>
    %90 = arith.truncf %78 : vector<8x32xf32> to vector<8x32xbf16>
    %91 = vector.shape_cast %90 : vector<8x32xbf16> to vector<1x8x32xbf16>
    %92 = arith.truncf %85 : vector<8x32xf32> to vector<8x32xbf16>
    %93 = vector.shape_cast %92 : vector<8x32xbf16> to vector<1x8x32xbf16>
    %94 = vector.extract_strided_slice %89 {offsets = [0, 0, 0], sizes = [1, 8, 8], strides = [1, 1, 1]} : vector<1x8x32xbf16> to vector<1x8x8xbf16>
    %95 = vector.extract_strided_slice %91 {offsets = [0, 0, 0], sizes = [1, 8, 8], strides = [1, 1, 1]} : vector<1x8x32xbf16> to vector<1x8x8xbf16>
    "tpu.trace_start"() <{level = 10 : i32, message = "bqd,bkd->bqk"}> : () -> ()
    %cst_51 = arith.constant dense<0.000000e+00> : vector<1x8x8xf32>
    %96 = tpu.matmul %94, %95, %cst_51 {dimension_numbers = #tpu.dot_dimension_numbers<[2], [2], [1], [1], [0, 0, 0, 1, 1, 1], [0], [0]>} : vector<1x8x8xbf16>, vector<1x8x8xbf16>, vector<1x8x8xf32> -> vector<1x8x8xf32>
    "tpu.trace_stop"() : () -> ()
    %cst_52 = arith.constant dense<0xFF800000> : vector<1x8xf32>
    %97 = vector.multi_reduction <maximumf>, %96, %cst_52 [2] : vector<1x8x8xf32> to vector<1x8xf32>
    %98 = vector.shape_cast %97 : vector<1x8xf32> to vector<1x8x1xf32>
    %99 = vector.broadcast %98 : vector<1x8x1xf32> to vector<1x8x8xf32>
    %100 = arith.subf %96, %99 : vector<1x8x8xf32>
    %101 = math.exp %100 : vector<1x8x8xf32>
    %cst_53 = arith.constant dense<0.000000e+00> : vector<1x8xf32>
    %102 = vector.multi_reduction <add>, %101, %cst_53 [2] : vector<1x8x8xf32> to vector<1x8xf32>
    %103 = vector.shape_cast %102 : vector<1x8xf32> to vector<1x8x1xf32>
    %104 = tpu.reciprocal %103 {approx = true} : vector<1x8x1xf32> -> vector<1x8x1xf32>
    %105 = vector.broadcast %104 : vector<1x8x1xf32> to vector<1x8x8xf32>
    %106 = arith.mulf %101, %105 : vector<1x8x8xf32>
    %107 = arith.truncf %106 : vector<1x8x8xf32> to vector<1x8x8xbf16>
    %108 = vector.extract_strided_slice %93 {offsets = [0, 0, 0], sizes = [1, 8, 8], strides = [1, 1, 1]} : vector<1x8x32xbf16> to vector<1x8x8xbf16>
    "tpu.trace_start"() <{level = 10 : i32, message = "bqk,bkd->bqd"}> : () -> ()
    %cst_54 = arith.constant dense<0.000000e+00> : vector<1x8x8xf32>
    %109 = tpu.matmul %107, %108, %cst_54 {dimension_numbers = #tpu.dot_dimension_numbers<[2], [1], [1], [2], [0, 0, 0, 1, 1, 2], [0], [0]>} : vector<1x8x8xbf16>, vector<1x8x8xbf16>, vector<1x8x8xf32> -> vector<1x8x8xf32>
    "tpu.trace_stop"() : () -> ()
    %110 = vector.extract_strided_slice %89 {offsets = [0, 0, 8], sizes = [1, 8, 8], strides = [1, 1, 1]} : vector<1x8x32xbf16> to vector<1x8x8xbf16>
    %111 = vector.extract_strided_slice %91 {offsets = [0, 0, 8], sizes = [1, 8, 8], strides = [1, 1, 1]} : vector<1x8x32xbf16> to vector<1x8x8xbf16>
    "tpu.trace_start"() <{level = 10 : i32, message = "bqd,bkd->bqk"}> : () -> ()
    %cst_55 = arith.constant dense<0.000000e+00> : vector<1x8x8xf32>
    %112 = tpu.matmul %110, %111, %cst_55 {dimension_numbers = #tpu.dot_dimension_numbers<[2], [2], [1], [1], [0, 0, 0, 1, 1, 1], [0], [0]>} : vector<1x8x8xbf16>, vector<1x8x8xbf16>, vector<1x8x8xf32> -> vector<1x8x8xf32>
    "tpu.trace_stop"() : () -> ()
    %cst_56 = arith.constant dense<0xFF800000> : vector<1x8xf32>
    %113 = vector.multi_reduction <maximumf>, %112, %cst_56 [2] : vector<1x8x8xf32> to vector<1x8xf32>
    %114 = vector.shape_cast %113 : vector<1x8xf32> to vector<1x8x1xf32>
    %115 = vector.broadcast %114 : vector<1x8x1xf32> to vector<1x8x8xf32>
    %116 = arith.subf %112, %115 : vector<1x8x8xf32>
    %117 = math.exp %116 : vector<1x8x8xf32>
    %cst_57 = arith.constant dense<0.000000e+00> : vector<1x8xf32>
    %118 = vector.multi_reduction <add>, %117, %cst_57 [2] : vector<1x8x8xf32> to vector<1x8xf32>
    %119 = vector.shape_cast %118 : vector<1x8xf32> to vector<1x8x1xf32>
    %120 = tpu.reciprocal %119 {approx = true} : vector<1x8x1xf32> -> vector<1x8x1xf32>
    %121 = vector.broadcast %120 : vector<1x8x1xf32> to vector<1x8x8xf32>
    %122 = arith.mulf %117, %121 : vector<1x8x8xf32>
    %123 = arith.truncf %122 : vector<1x8x8xf32> to vector<1x8x8xbf16>
    %124 = vector.extract_strided_slice %93 {offsets = [0, 0, 8], sizes = [1, 8, 8], strides = [1, 1, 1]} : vector<1x8x32xbf16> to vector<1x8x8xbf16>
    "tpu.trace_start"() <{level = 10 : i32, message = "bqk,bkd->bqd"}> : () -> ()
    %cst_58 = arith.constant dense<0.000000e+00> : vector<1x8x8xf32>
    %125 = tpu.matmul %123, %124, %cst_58 {dimension_numbers = #tpu.dot_dimension_numbers<[2], [1], [1], [2], [0, 0, 0, 1, 1, 2], [0], [0]>} : vector<1x8x8xbf16>, vector<1x8x8xbf16>, vector<1x8x8xf32> -> vector<1x8x8xf32>
    "tpu.trace_stop"() : () -> ()
    %126 = vector.extract_strided_slice %89 {offsets = [0, 0, 16], sizes = [1, 8, 8], strides = [1, 1, 1]} : vector<1x8x32xbf16> to vector<1x8x8xbf16>
    %127 = vector.extract_strided_slice %91 {offsets = [0, 0, 16], sizes = [1, 8, 8], strides = [1, 1, 1]} : vector<1x8x32xbf16> to vector<1x8x8xbf16>
    "tpu.trace_start"() <{level = 10 : i32, message = "bqd,bkd->bqk"}> : () -> ()
    %cst_59 = arith.constant dense<0.000000e+00> : vector<1x8x8xf32>
    %128 = tpu.matmul %126, %127, %cst_59 {dimension_numbers = #tpu.dot_dimension_numbers<[2], [2], [1], [1], [0, 0, 0, 1, 1, 1], [0], [0]>} : vector<1x8x8xbf16>, vector<1x8x8xbf16>, vector<1x8x8xf32> -> vector<1x8x8xf32>
    "tpu.trace_stop"() : () -> ()
    %cst_60 = arith.constant dense<0xFF800000> : vector<1x8xf32>
    %129 = vector.multi_reduction <maximumf>, %128, %cst_60 [2] : vector<1x8x8xf32> to vector<1x8xf32>
    %130 = vector.shape_cast %129 : vector<1x8xf32> to vector<1x8x1xf32>
    %131 = vector.broadcast %130 : vector<1x8x1xf32> to vector<1x8x8xf32>
    %132 = arith.subf %128, %131 : vector<1x8x8xf32>
    %133 = math.exp %132 : vector<1x8x8xf32>
    %cst_61 = arith.constant dense<0.000000e+00> : vector<1x8xf32>
    %134 = vector.multi_reduction <add>, %133, %cst_61 [2] : vector<1x8x8xf32> to vector<1x8xf32>
    %135 = vector.shape_cast %134 : vector<1x8xf32> to vector<1x8x1xf32>
    %136 = tpu.reciprocal %135 {approx = true} : vector<1x8x1xf32> -> vector<1x8x1xf32>
    %137 = vector.broadcast %136 : vector<1x8x1xf32> to vector<1x8x8xf32>
    %138 = arith.mulf %133, %137 : vector<1x8x8xf32>
    %139 = arith.truncf %138 : vector<1x8x8xf32> to vector<1x8x8xbf16>
    %140 = vector.extract_strided_slice %93 {offsets = [0, 0, 16], sizes = [1, 8, 8], strides = [1, 1, 1]} : vector<1x8x32xbf16> to vector<1x8x8xbf16>
    "tpu.trace_start"() <{level = 10 : i32, message = "bqk,bkd->bqd"}> : () -> ()
    %cst_62 = arith.constant dense<0.000000e+00> : vector<1x8x8xf32>
    %141 = tpu.matmul %139, %140, %cst_62 {dimension_numbers = #tpu.dot_dimension_numbers<[2], [1], [1], [2], [0, 0, 0, 1, 1, 2], [0], [0]>} : vector<1x8x8xbf16>, vector<1x8x8xbf16>, vector<1x8x8xf32> -> vector<1x8x8xf32>
    "tpu.trace_stop"() : () -> ()
    %142 = vector.extract_strided_slice %89 {offsets = [0, 0, 24], sizes = [1, 8, 8], strides = [1, 1, 1]} : vector<1x8x32xbf16> to vector<1x8x8xbf16>
    %143 = vector.extract_strided_slice %91 {offsets = [0, 0, 24], sizes = [1, 8, 8], strides = [1, 1, 1]} : vector<1x8x32xbf16> to vector<1x8x8xbf16>
    "tpu.trace_start"() <{level = 10 : i32, message = "bqd,bkd->bqk"}> : () -> ()
    %cst_63 = arith.constant dense<0.000000e+00> : vector<1x8x8xf32>
    %144 = tpu.matmul %142, %143, %cst_63 {dimension_numbers = #tpu.dot_dimension_numbers<[2], [2], [1], [1], [0, 0, 0, 1, 1, 1], [0], [0]>} : vector<1x8x8xbf16>, vector<1x8x8xbf16>, vector<1x8x8xf32> -> vector<1x8x8xf32>
    "tpu.trace_stop"() : () -> ()
    %cst_64 = arith.constant dense<0xFF800000> : vector<1x8xf32>
    %145 = vector.multi_reduction <maximumf>, %144, %cst_64 [2] : vector<1x8x8xf32> to vector<1x8xf32>
    %146 = vector.shape_cast %145 : vector<1x8xf32> to vector<1x8x1xf32>
    %147 = vector.broadcast %146 : vector<1x8x1xf32> to vector<1x8x8xf32>
    %148 = arith.subf %144, %147 : vector<1x8x8xf32>
    %149 = math.exp %148 : vector<1x8x8xf32>
    %cst_65 = arith.constant dense<0.000000e+00> : vector<1x8xf32>
    %150 = vector.multi_reduction <add>, %149, %cst_65 [2] : vector<1x8x8xf32> to vector<1x8xf32>
    %151 = vector.shape_cast %150 : vector<1x8xf32> to vector<1x8x1xf32>
    %152 = tpu.reciprocal %151 {approx = true} : vector<1x8x1xf32> -> vector<1x8x1xf32>
    %153 = vector.broadcast %152 : vector<1x8x1xf32> to vector<1x8x8xf32>
    %154 = arith.mulf %149, %153 : vector<1x8x8xf32>
    %155 = arith.truncf %154 : vector<1x8x8xf32> to vector<1x8x8xbf16>
    %156 = vector.extract_strided_slice %93 {offsets = [0, 0, 24], sizes = [1, 8, 8], strides = [1, 1, 1]} : vector<1x8x32xbf16> to vector<1x8x8xbf16>
    "tpu.trace_start"() <{level = 10 : i32, message = "bqk,bkd->bqd"}> : () -> ()
    %cst_66 = arith.constant dense<0.000000e+00> : vector<1x8x8xf32>
    %157 = tpu.matmul %155, %156, %cst_66 {dimension_numbers = #tpu.dot_dimension_numbers<[2], [1], [1], [2], [0, 0, 0, 1, 1, 2], [0], [0]>} : vector<1x8x8xbf16>, vector<1x8x8xbf16>, vector<1x8x8xf32> -> vector<1x8x8xf32>
    "tpu.trace_stop"() : () -> ()
    %158 = tpu.concatenate %109, %125, %141, %157 in 2 : vector<1x8x8xf32>, vector<1x8x8xf32>, vector<1x8x8xf32>, vector<1x8x8xf32> -> vector<1x8x32xf32>
    %159 = arith.addf %3, %158 : vector<1x8x32xf32>
    %160 = vector.shape_cast %159 : vector<1x8x32xf32> to vector<8x32xf32>
    %c0_67 = arith.constant 0 : index
    %c0_68 = arith.constant 0 : index
    %c0_69 = arith.constant 0 : index
    %161 = vector.load %arg14[%c0_67, %c0_68, %c0_69] : memref<1x1x32xf32, #tpu.memory_space<vmem>>, vector<1x1x32xf32>
    %162 = vector.shape_cast %161 : vector<1x1x32xf32> to vector<1x32xf32>
    %c0_70 = arith.constant 0 : index
    %c0_71 = arith.constant 0 : index
    %c0_72 = arith.constant 0 : index
    %163 = vector.load %arg15[%c0_70, %c0_71, %c0_72] : memref<1x1x32xf32, #tpu.memory_space<vmem>>, vector<1x1x32xf32>
    %164 = vector.shape_cast %163 : vector<1x1x32xf32> to vector<1x32xf32>
    %cst_73 = arith.constant dense<0.000000e+00> : vector<8xf32>
    %165 = vector.multi_reduction <add>, %160, %cst_73 [1] : vector<8x32xf32> to vector<8xf32>
    %166 = vector.shape_cast %165 : vector<8xf32> to vector<8x1xf32>
    %cst_74 = arith.constant 3.200000e+01 : f32
    %167 = vector.broadcast %cst_74 : f32 to vector<8x1xf32>
    %168 = arith.divf %166, %167 : vector<8x1xf32>
    %169 = arith.mulf %160, %160 : vector<8x32xf32>
    %cst_75 = arith.constant dense<0.000000e+00> : vector<8xf32>
    %170 = vector.multi_reduction <add>, %169, %cst_75 [1] : vector<8x32xf32> to vector<8xf32>
    %171 = vector.shape_cast %170 : vector<8xf32> to vector<8x1xf32>
    %cst_76 = arith.constant 3.200000e+01 : f32
    %172 = vector.broadcast %cst_76 : f32 to vector<8x1xf32>
    %173 = arith.divf %171, %172 : vector<8x1xf32>
    %174 = arith.mulf %168, %168 : vector<8x1xf32>
    %175 = arith.subf %173, %174 : vector<8x1xf32>
    %cst_77 = arith.constant 0.000000e+00 : f32
    %176 = vector.broadcast %cst_77 : f32 to vector<8x1xf32>
    %177 = arith.maximumf %175, %176 : vector<8x1xf32>
    %178 = vector.broadcast %168 : vector<8x1xf32> to vector<8x32xf32>
    %179 = arith.subf %160, %178 : vector<8x32xf32>
    %cst_78 = arith.constant 9.99999974E-6 : f32
    %180 = vector.broadcast %cst_78 : f32 to vector<8x1xf32>
    %181 = arith.addf %177, %180 : vector<8x1xf32>
    %182 = math.rsqrt %181 : vector<8x1xf32>
    %183 = vector.broadcast %182 : vector<8x1xf32> to vector<8x32xf32>
    %184 = arith.mulf %179, %183 : vector<8x32xf32>
    %185 = vector.broadcast %162 : vector<1x32xf32> to vector<8x32xf32>
    %186 = arith.mulf %184, %185 : vector<8x32xf32>
    %187 = vector.broadcast %164 : vector<1x32xf32> to vector<8x32xf32>
    %188 = arith.addf %186, %187 : vector<8x32xf32>
    %189 = arith.truncf %188 : vector<8x32xf32> to vector<8x32xbf16>
    %c0_79 = arith.constant 0 : index
    %c0_80 = arith.constant 0 : index
    %c0_81 = arith.constant 0 : index
    %190 = vector.load %arg16[%c0_79, %c0_80, %c0_81] : memref<1x32x128xbf16, #tpu.memory_space<vmem>>, vector<1x32x128xbf16>
    %191 = vector.shape_cast %190 : vector<1x32x128xbf16> to vector<32x128xbf16>
    %cst_82 = arith.constant dense<0.000000e+00> : vector<8x128xf32>
    %192 = tpu.matmul %189, %191, %cst_82 {dimension_numbers = #tpu.dot_dimension_numbers<[1], [0], [0], [1], [0, 0, 1, 1], [], []>} : vector<8x32xbf16>, vector<32x128xbf16>, vector<8x128xf32> -> vector<8x128xf32>
    %c0_83 = arith.constant 0 : index
    %c0_84 = arith.constant 0 : index
    %c0_85 = arith.constant 0 : index
    %193 = vector.load %arg17[%c0_83, %c0_84, %c0_85] : memref<1x1x128xf32, #tpu.memory_space<vmem>>, vector<1x1x128xf32>
    %194 = vector.shape_cast %193 : vector<1x1x128xf32> to vector<1x128xf32>
    %195 = vector.broadcast %194 : vector<1x128xf32> to vector<8x128xf32>
    %196 = arith.addf %192, %195 : vector<8x128xf32>
    %cst_86 = arith.constant -1.702000e+00 : f32
    %197 = vector.broadcast %cst_86 : f32 to vector<8x128xf32>
    %198 = arith.mulf %197, %196 : vector<8x128xf32>
    %199 = math.exp %198 : vector<8x128xf32>
    %cst_87 = arith.constant 1.000000e+00 : f32
    %200 = vector.broadcast %cst_87 : f32 to vector<8x128xf32>
    %201 = arith.addf %200, %199 : vector<8x128xf32>
    %cst_88 = arith.constant 1.000000e+00 : f32
    %202 = vector.broadcast %cst_88 : f32 to vector<8x128xf32>
    %203 = arith.divf %202, %201 : vector<8x128xf32>
    %204 = arith.mulf %196, %203 : vector<8x128xf32>
    %205 = arith.truncf %204 : vector<8x128xf32> to vector<8x128xbf16>
    %c0_89 = arith.constant 0 : index
    %c0_90 = arith.constant 0 : index
    %c0_91 = arith.constant 0 : index
    %206 = vector.load %arg18[%c0_89, %c0_90, %c0_91] : memref<1x128x32xbf16, #tpu.memory_space<vmem>>, vector<1x128x32xbf16>
    %207 = vector.shape_cast %206 : vector<1x128x32xbf16> to vector<128x32xbf16>
    %cst_92 = arith.constant dense<0.000000e+00> : vector<8x32xf32>
    %208 = tpu.matmul %205, %207, %cst_92 {dimension_numbers = #tpu.dot_dimension_numbers<[1], [0], [0], [1], [0, 0, 1, 1], [], []>} : vector<8x128xbf16>, vector<128x32xbf16>, vector<8x32xf32> -> vector<8x32xf32>
    %c0_93 = arith.constant 0 : index
    %c0_94 = arith.constant 0 : index
    %c0_95 = arith.constant 0 : index
    %209 = vector.load %arg19[%c0_93, %c0_94, %c0_95] : memref<1x1x32xf32, #tpu.memory_space<vmem>>, vector<1x1x32xf32>
    %210 = vector.shape_cast %209 : vector<1x1x32xf32> to vector<1x32xf32>
    %211 = vector.broadcast %210 : vector<1x32xf32> to vector<8x32xf32>
    %212 = arith.addf %208, %211 : vector<8x32xf32>
    %213 = vector.shape_cast %212 : vector<8x32xf32> to vector<1x8x32xf32>
    %214 = arith.addf %159, %213 : vector<1x8x32xf32>
    %c0_96 = arith.constant 0 : index
    %c0_97 = arith.constant 0 : index
    %c0_98 = arith.constant 0 : index
    %215 = vector.load %arg21[%c0_96, %c0_97, %c0_98] : memref<1x8x32xf32, #tpu.memory_space<vmem>>, vector<1x8x32xf32>
    tpu.vector_store %arg21[%c0_96, %c0_97, %c0_98], %214 {strides = array<i32>} : memref<1x8x32xf32, #tpu.memory_space<vmem>>, vector<1x8x32xf32>,
    %c1_i32 = arith.constant 1 : i32
    %216 = arith.cmpi eq, %arg1, %c1_i32 : i32
    %217 = arith.extui %216 : i1 to i32
    %c0_i32_99 = arith.constant 0 : i32
    %218 = arith.cmpi ne, %217, %c0_i32_99 : i32
    scf.if %218 {
      %c0_100 = arith.constant 0 : index
      %c0_101 = arith.constant 0 : index
      %c0_102 = arith.constant 0 : index
      %219 = vector.load %arg20[%c0_100, %c0_101, %c0_102] : memref<1x8x32xf32, #tpu.memory_space<vmem>>, vector<1x8x32xf32>
      tpu.vector_store %arg20[%c0_100, %c0_101, %c0_102], %214 {strides = array<i32>} : memref<1x8x32xf32, #tpu.memory_space<vmem>>, vector<1x8x32xf32>,
    } else {
    }
    return
  }
  func.func @transform_0(%arg0: i32, %arg1: i32) -> (i32, i32, i32) {
    %c0_i32 = arith.constant 0 : i32
    %c0_i32_0 = arith.constant 0 : i32
    %c0_i32_1 = arith.constant 0 : i32
    return %arg0, %c0_i32, %c0_i32_0 : i32, i32, i32
  }
  func.func @transform_1(%arg0: i32, %arg1: i32) -> (i32, i32, i32) {
    %c0_i32 = arith.constant 0 : i32
    %c0_i32_0 = arith.constant 0 : i32
    %c0_i32_1 = arith.constant 0 : i32
    return %arg0, %c0_i32, %c0_i32_0 : i32, i32, i32
  }
  func.func @transform_2(%arg0: i32, %arg1: i32) -> (i32, i32, i32) {
    %c0_i32 = arith.constant 0 : i32
    %c0_i32_0 = arith.constant 0 : i32
    %c0_i32_1 = arith.constant 0 : i32
    return %arg1, %c0_i32, %c0_i32_0 : i32, i32, i32
  }
  func.func @transform_3(%arg0: i32, %arg1: i32) -> (i32, i32, i32) {
    %c0_i32 = arith.constant 0 : i32
    %c0_i32_0 = arith.constant 0 : i32
    %c0_i32_1 = arith.constant 0 : i32
    return %arg1, %c0_i32, %c0_i32_0 : i32, i32, i32
  }
  func.func @transform_4(%arg0: i32, %arg1: i32) -> (i32, i32, i32) {
    %c0_i32 = arith.constant 0 : i32
    %c0_i32_0 = arith.constant 0 : i32
    %c0_i32_1 = arith.constant 0 : i32
    return %arg1, %c0_i32, %c0_i32_0 : i32, i32, i32
  }
  func.func @transform_5(%arg0: i32, %arg1: i32) -> (i32, i32, i32) {
    %c0_i32 = arith.constant 0 : i32
    %c0_i32_0 = arith.constant 0 : i32
    %c0_i32_1 = arith.constant 0 : i32
    return %arg1, %c0_i32, %c0_i32_0 : i32, i32, i32
  }
  func.func @transform_6(%arg0: i32, %arg1: i32) -> (i32, i32, i32) {
    %c0_i32 = arith.constant 0 : i32
    %c0_i32_0 = arith.constant 0 : i32
    %c0_i32_1 = arith.constant 0 : i32
    return %arg1, %c0_i32, %c0_i32_0 : i32, i32, i32
  }
  func.func @transform_7(%arg0: i32, %arg1: i32) -> (i32, i32, i32) {
    %c0_i32 = arith.constant 0 : i32
    %c0_i32_0 = arith.constant 0 : i32
    %c0_i32_1 = arith.constant 0 : i32
    return %arg1, %c0_i32, %c0_i32_0 : i32, i32, i32
  }
  func.func @transform_8(%arg0: i32, %arg1: i32) -> (i32, i32, i32) {
    %c0_i32 = arith.constant 0 : i32
    %c0_i32_0 = arith.constant 0 : i32
    %c0_i32_1 = arith.constant 0 : i32
    return %arg1, %c0_i32, %c0_i32_0 : i32, i32, i32
  }
  func.func @transform_9(%arg0: i32, %arg1: i32) -> (i32, i32, i32) {
    %c0_i32 = arith.constant 0 : i32
    %c0_i32_0 = arith.constant 0 : i32
    %c0_i32_1 = arith.constant 0 : i32
    return %arg1, %c0_i32, %c0_i32_0 : i32, i32, i32
  }
  func.func @transform_10(%arg0: i32, %arg1: i32) -> (i32, i32, i32) {
    %c0_i32 = arith.constant 0 : i32
    %c0_i32_0 = arith.constant 0 : i32
    %c0_i32_1 = arith.constant 0 : i32
    return %arg1, %c0_i32, %c0_i32_0 : i32, i32, i32
  }
  func.func @transform_11(%arg0: i32, %arg1: i32) -> (i32, i32, i32) {
    %c0_i32 = arith.constant 0 : i32
    %c0_i32_0 = arith.constant 0 : i32
    %c0_i32_1 = arith.constant 0 : i32
    return %arg1, %c0_i32, %c0_i32_0 : i32, i32, i32
  }
  func.func @transform_12(%arg0: i32, %arg1: i32) -> (i32, i32, i32) {
    %c0_i32 = arith.constant 0 : i32
    %c0_i32_0 = arith.constant 0 : i32
    %c0_i32_1 = arith.constant 0 : i32
    return %arg1, %c0_i32, %c0_i32_0 : i32, i32, i32
  }
  func.func @transform_13(%arg0: i32, %arg1: i32) -> (i32, i32, i32) {
    %c0_i32 = arith.constant 0 : i32
    %c0_i32_0 = arith.constant 0 : i32
    %c0_i32_1 = arith.constant 0 : i32
    return %arg1, %c0_i32, %c0_i32_0 : i32, i32, i32
  }
  func.func @transform_14(%arg0: i32, %arg1: i32) -> (i32, i32, i32) {
    %c0_i32 = arith.constant 0 : i32
    %c0_i32_0 = arith.constant 0 : i32
    %c0_i32_1 = arith.constant 0 : i32
    return %arg1, %c0_i32, %c0_i32_0 : i32, i32, i32
  }
  func.func @transform_15(%arg0: i32, %arg1: i32) -> (i32, i32, i32) {
    %c0_i32 = arith.constant 0 : i32
    %c0_i32_0 = arith.constant 0 : i32
    %c0_i32_1 = arith.constant 0 : i32
    return %arg1, %c0_i32, %c0_i32_0 : i32, i32, i32
  }
  func.func @transform_16(%arg0: i32, %arg1: i32) -> (i32, i32, i32) {
    %c0_i32 = arith.constant 0 : i32
    %c0_i32_0 = arith.constant 0 : i32
    %c0_i32_1 = arith.constant 0 : i32
    return %arg1, %c0_i32, %c0_i32_0 : i32, i32, i32
  }
  func.func @transform_17(%arg0: i32, %arg1: i32) -> (i32, i32, i32) {
    %c0_i32 = arith.constant 0 : i32
    %c0_i32_0 = arith.constant 0 : i32
    %c0_i32_1 = arith.constant 0 : i32
    return %arg1, %c0_i32, %c0_i32_0 : i32, i32, i32
  }
  func.func @transform_18(%arg0: i32, %arg1: i32) -> (i32, i32, i32) {
    %c0_i32 = arith.constant 0 : i32
    %c0_i32_0 = arith.constant 0 : i32
    %c0_i32_1 = arith.constant 0 : i32
    return %arg0, %c0_i32, %c0_i32_0 : i32, i32, i32
  }
}

</mosaic_0001>

<llo_original>
// kernel: tpu_custom_call.1
$region0: #{tpu_custom_call.1}
  #allocation0 [shape = 'u32[]', space=smem, size = 0x4, offset = 0x4, fixed_abs, tag = 'smem constant byte address 0x4 - core index']
  #allocation1 [shape = 'u32[144,128]{1,0:T(1,128)}', space=vmem, size = 0x12000, scoped, tag = 'internal scratch']
  #allocation2 [shape = 'f32[1,8,32]{2,1,0:T(8,128)}', space=vmem, size = 0x1000, scoped, tag = 'scratch operand']
  %s0 = inlined_call_operand.vmem [shape: f32[2,8,32], index: 0, kind: input, shape index: {}]
  %s1 = inlined_call_operand.vmem [shape: f32[2,8,32], index: 1, kind: input, shape index: {}]
  %s2 = inlined_call_operand.vmem [shape: f32[2,1,32], index: 2, kind: input, shape index: {}]
  %s3 = inlined_call_operand.vmem [shape: f32[2,1,32], index: 3, kind: input, shape index: {}]
  %s4 = inlined_call_operand.vmem [shape: f32[2,1,32], index: 4, kind: input, shape index: {}]
  %s5 = inlined_call_operand.vmem [shape: f32[2,1,32], index: 5, kind: input, shape index: {}]
  %s6 = inlined_call_operand.vmem [shape: bf16[2,32,32], index: 6, kind: input, shape index: {}]
  %s7 = inlined_call_operand.vmem [shape: f32[2,1,32], index: 7, kind: input, shape index: {}]
  %s8 = inlined_call_operand.vmem [shape: bf16[2,32,32], index: 8, kind: input, shape index: {}]
  %s9 = inlined_call_operand.vmem [shape: f32[2,1,32], index: 9, kind: input, shape index: {}]
  %s10 = inlined_call_operand.vmem [shape: bf16[2,32,32], index: 10, kind: input, shape index: {}]
  %s11 = inlined_call_operand.vmem [shape: f32[2,1,32], index: 11, kind: input, shape index: {}]
  %s12 = inlined_call_operand.vmem [shape: f32[2,1,32], index: 12, kind: input, shape index: {}]
  %s13 = inlined_call_operand.vmem [shape: f32[2,1,32], index: 13, kind: input, shape index: {}]
  %s14 = inlined_call_operand.vmem [shape: bf16[2,32,128], index: 14, kind: input, shape index: {}]
  %s15 = inlined_call_operand.vmem [shape: f32[2,1,128], index: 15, kind: input, shape index: {}]
  %s16 = inlined_call_operand.vmem [shape: bf16[2,128,32], index: 16, kind: input, shape index: {}]
  %s17 = inlined_call_operand.vmem [shape: f32[2,1,32], index: 17, kind: input, shape index: {}]
  %s18 = inlined_call_operand.hbm [shape: f32[2,8,32], index: 18, kind: output, shape index: {}]
  %s19 = sld [smem:[#allocation0]]
  $region113: #{tpu_custom_call.1} parent=0
    _
  %s21 = ssub.s32 1, %s19
  %s22 = scalar_select 0, %s21, %s19
  $region1: #{tpu_custom_call.1} parent=0
    #allocation3 [shape = 'u8[8192]{0}', space=vmem, size = 0x2000, scoped, tag = 'output window, operand 0']
    #allocation4 [shape = 's32[2]{0}', space=sflag, size = 0x8, scoped, tag = 'scoped memory for tpu_custom_call.1']
    %23 = vsyncpa [#allocation4], 0
    %s24 = scalar_lea.sflag [#allocation4], 1
    %25 = vsyncpa %s24, 0
    loop: start=0, step=1, limit=6
    $region2: #{tpu_custom_call.1} parent=1 // loop_pre_header
      _
    $region3: #{tpu_custom_call.1} parent=1 // loop_header
      %s27 = sphi 0, %s31
      %p28 = scmp.ge.s32.totalorder %s27, 6
      %s34 = sphi 0, %s46
      %s35 = sphi 0, %s42
      %s36 = sphi 0, %s34
      %s37 = sphi 0, %s35
      %s38 = sphi 0, %s36
      %s39 = sphi 0, %s37
      %s49 = sphi 0, %s51
      %s52 = sphi 0, %s49
      %s53 = sphi 0, %s52
      %s69 = sphi 0, %s53
      %s75 = sphi 0, %s77
      %s78 = sphi 0, %s75
      %s79 = sphi 0, %s78
      %s95 = sphi 0, %s79
      %s101 = sphi 0, %s103
      %s104 = sphi 0, %s101
      %s105 = sphi 0, %s104
      %s121 = sphi 0, %s105
      %s127 = sphi 0, %s129
      %s130 = sphi 0, %s127
      %s131 = sphi 0, %s130
      %s147 = sphi 0, %s131
      %s153 = sphi 0, %s155
      %s156 = sphi 0, %s153
      %s157 = sphi 0, %s156
      %s173 = sphi 0, %s157
      %s179 = sphi 0, %s181
      %s182 = sphi 0, %s179
      %s183 = sphi 0, %s182
      %s199 = sphi 0, %s183
      %s205 = sphi 0, %s207
      %s208 = sphi 0, %s205
      %s209 = sphi 0, %s208
      %s225 = sphi 0, %s209
      %s231 = sphi 0, %s233
      %s234 = sphi 0, %s231
      %s235 = sphi 0, %s234
      %s251 = sphi 0, %s235
      %s257 = sphi 0, %s259
      %s260 = sphi 0, %s257
      %s261 = sphi 0, %s260
      %s277 = sphi 0, %s261
      %s283 = sphi 0, %s285
      %s286 = sphi 0, %s283
      %s287 = sphi 0, %s286
      %s303 = sphi 0, %s287
      %s309 = sphi 0, %s311
      %s312 = sphi 0, %s309
      %s313 = sphi 0, %s312
      %s329 = sphi 0, %s313
      %s335 = sphi 0, %s337
      %s338 = sphi 0, %s335
      %s339 = sphi 0, %s338
      %s355 = sphi 0, %s339
      %s361 = sphi 0, %s363
      %s364 = sphi 0, %s361
      %s365 = sphi 0, %s364
      %s381 = sphi 0, %s365
      %s387 = sphi 0, %s389
      %s390 = sphi 0, %s387
      %s391 = sphi 0, %s390
      %s407 = sphi 0, %s391
      %s413 = sphi 0, %s415
      %s416 = sphi 0, %s413
      %s417 = sphi 0, %s416
      %s433 = sphi 0, %s417
      %s439 = sphi 0, %s441
      %s442 = sphi 0, %s439
      %s443 = sphi 0, %s442
      %s459 = sphi 0, %s443
      %s465 = sphi 0, %s467
      %s468 = sphi 0, %s465
      %s469 = sphi 0, %s468
      %s485 = sphi 0, %s469
      %s491 = sphi 0, %s493
      %s494 = sphi 0, %s491
      %s495 = sphi 0, %s494
      %s511 = sphi 0, %s495
      %s517 = sphi 0, %s519
      %s520 = sphi 0, %s517
      %s521 = sphi 0, %s520
      %s537 = sphi 0, %s521
    $region4: #{tpu_custom_call.1} parent=1 // loop_header_branch
      %30 = sbr.rel (%p28) target = $region8
    $region5: #{tpu_custom_call.1} parent=1 // loop_body
      %s32 = ssub.s32 %s27, 1
      %s33 = ssub.s32 %s27, 2
      %s40 = sadd.s32 1, %s35
      %p41 = scmp.ge.s32.totalorder %s40, 2
      %s42 = scalar_select %p41, 0, %s40
      %s43 = sadd.s32 1, %s34
      %s44 = scalar_select %p41, %s43, %s34
      %p45 = scmp.ge.s32.totalorder %s44, 2
      %s46 = scalar_select %p45, 0, %s44
      %s47 = ssub.s32 %s34, %s46
      %p48 = scmp.eq.s32.totalorder %s47, 0
      %s50 = sadd.s32 %s49, 1
      %s51 = scalar_select %p48, %s49, %s50
      %p54 = pneg %p48
      %p55 = scmp.eq.s32.totalorder %s27, 3
      %p56 = por %p54, %p55
      %p57 = scmp.ne.s32.totalorder %s49, %s52
      %p58 = scmp.eq.s32.totalorder %s27, 0
      %p59 = por %p57, %p58
      %p60 = scmp.ne.s32.totalorder %s49, %s52
      %p61 = scmp.eq.s32.totalorder %s32, 3
      %p62 = por %p60, %p61
      %p63 = scmp.ne.s32.totalorder %s52, %s53
      %p64 = scmp.eq.s32.totalorder %s32, 0
      %p65 = por %p63, %p64
      %p66 = scmp.ne.s32.totalorder %s52, %s53
      %p67 = scmp.eq.s32.totalorder %s33, 3
      %p68 = por %p66, %p67
      %p70 = scmp.ne.s32.totalorder %s53, %s69
      %p71 = scmp.eq.s32.totalorder %s33, 0
      %p72 = por %p70, %p71
      %s73 = ssub.s32 %s34, %s46
      %p74 = scmp.eq.s32.totalorder %s73, 0
      %s76 = sadd.s32 %s75, 1
      %s77 = scalar_select %p74, %s75, %s76
      %p80 = pneg %p74
      %p81 = scmp.eq.s32.totalorder %s27, 3
      %p82 = por %p80, %p81
      %p83 = scmp.ne.s32.totalorder %s75, %s78
      %p84 = scmp.eq.s32.totalorder %s27, 0
      %p85 = por %p83, %p84
      %p86 = scmp.ne.s32.totalorder %s75, %s78
      %p87 = scmp.eq.s32.totalorder %s32, 3
      %p88 = por %p86, %p87
      %p89 = scmp.ne.s32.totalorder %s78, %s79
      %p90 = scmp.eq.s32.totalorder %s32, 0
      %p91 = por %p89, %p90
      %p92 = scmp.ne.s32.totalorder %s78, %s79
      %p93 = scmp.eq.s32.totalorder %s33, 3
      %p94 = por %p92, %p93
      %p96 = scmp.ne.s32.totalorder %s79, %s95
      %p97 = scmp.eq.s32.totalorder %s33, 0
      %p98 = por %p96, %p97
      %s99 = ssub.s32 %s35, %s42
      %p100 = scmp.eq.s32.totalorder %s99, 0
      %s102 = sadd.s32 %s101, 1
      %s103 = scalar_select %p100, %s101, %s102
      %p106 = pneg %p100
      %p107 = scmp.eq.s32.totalorder %s27, 3
      %p108 = por %p106, %p107
      %p109 = scmp.ne.s32.totalorder %s101, %s104
      %p110 = scmp.eq.s32.totalorder %s27, 0
      %p111 = por %p109, %p110
      %p112 = scmp.ne.s32.totalorder %s101, %s104
      %p113 = scmp.eq.s32.totalorder %s32, 3
      %p114 = por %p112, %p113
      %p115 = scmp.ne.s32.totalorder %s104, %s105
      %p116 = scmp.eq.s32.totalorder %s32, 0
      %p117 = por %p115, %p116
      %p118 = scmp.ne.s32.totalorder %s104, %s105
      %p119 = scmp.eq.s32.totalorder %s33, 3
      %p120 = por %p118, %p119
      %p122 = scmp.ne.s32.totalorder %s105, %s121
      %p123 = scmp.eq.s32.totalorder %s33, 0
      %p124 = por %p122, %p123
      %s125 = ssub.s32 %s35, %s42
      %p126 = scmp.eq.s32.totalorder %s125, 0
      %s128 = sadd.s32 %s127, 1
      %s129 = scalar_select %p126, %s127, %s128
      %p132 = pneg %p126
      %p133 = scmp.eq.s32.totalorder %s27, 3
      %p134 = por %p132, %p133
      %p135 = scmp.ne.s32.totalorder %s127, %s130
      %p136 = scmp.eq.s32.totalorder %s27, 0
      %p137 = por %p135, %p136
      %p138 = scmp.ne.s32.totalorder %s127, %s130
      %p139 = scmp.eq.s32.totalorder %s32, 3
      %p140 = por %p138, %p139
      %p141 = scmp.ne.s32.totalorder %s130, %s131
      %p142 = scmp.eq.s32.totalorder %s32, 0
      %p143 = por %p141, %p142
      %p144 = scmp.ne.s32.totalorder %s130, %s131
      %p145 = scmp.eq.s32.totalorder %s33, 3
      %p146 = por %p144, %p145
      %p148 = scmp.ne.s32.totalorder %s131, %s147
      %p149 = scmp.eq.s32.totalorder %s33, 0
      %p150 = por %p148, %p149
      %s151 = ssub.s32 %s35, %s42
      %p152 = scmp.eq.s32.totalorder %s151, 0
      %s154 = sadd.s32 %s153, 1
      %s155 = scalar_select %p152, %s153, %s154
      %p158 = pneg %p152
      %p159 = scmp.eq.s32.totalorder %s27, 3
      %p160 = por %p158, %p159
      %p161 = scmp.ne.s32.totalorder %s153, %s156
      %p162 = scmp.eq.s32.totalorder %s27, 0
      %p163 = por %p161, %p162
      %p164 = scmp.ne.s32.totalorder %s153, %s156
      %p165 = scmp.eq.s32.totalorder %s32, 3
      %p166 = por %p164, %p165
      %p167 = scmp.ne.s32.totalorder %s156, %s157
      %p168 = scmp.eq.s32.totalorder %s32, 0
      %p169 = por %p167, %p168
      %p170 = scmp.ne.s32.totalorder %s156, %s157
      %p171 = scmp.eq.s32.totalorder %s33, 3
      %p172 = por %p170, %p171
      %p174 = scmp.ne.s32.totalorder %s157, %s173
      %p175 = scmp.eq.s32.totalorder %s33, 0
      %p176 = por %p174, %p175
      %s177 = ssub.s32 %s35, %s42
      %p178 = scmp.eq.s32.totalorder %s177, 0
      %s180 = sadd.s32 %s179, 1
      %s181 = scalar_select %p178, %s179, %s180
      %p184 = pneg %p178
      %p185 = scmp.eq.s32.totalorder %s27, 3
      %p186 = por %p184, %p185
      %p187 = scmp.ne.s32.totalorder %s179, %s182
      %p188 = scmp.eq.s32.totalorder %s27, 0
      %p189 = por %p187, %p188
      %p190 = scmp.ne.s32.totalorder %s179, %s182
      %p191 = scmp.eq.s32.totalorder %s32, 3
      %p192 = por %p190, %p191
      %p193 = scmp.ne.s32.totalorder %s182, %s183
      %p194 = scmp.eq.s32.totalorder %s32, 0
      %p195 = por %p193, %p194
      %p196 = scmp.ne.s32.totalorder %s182, %s183
      %p197 = scmp.eq.s32.totalorder %s33, 3
      %p198 = por %p196, %p197
      %p200 = scmp.ne.s32.totalorder %s183, %s199
      %p201 = scmp.eq.s32.totalorder %s33, 0
      %p202 = por %p200, %p201
      %s203 = ssub.s32 %s35, %s42
      %p204 = scmp.eq.s32.totalorder %s203, 0
      %s206 = sadd.s32 %s205, 1
      %s207 = scalar_select %p204, %s205, %s206
      %p210 = pneg %p204
      %p211 = scmp.eq.s32.totalorder %s27, 3
      %p212 = por %p210, %p211
      %p213 = scmp.ne.s32.totalorder %s205, %s208
      %p214 = scmp.eq.s32.totalorder %s27, 0
      %p215 = por %p213, %p214
      %p216 = scmp.ne.s32.totalorder %s205, %s208
      %p217 = scmp.eq.s32.totalorder %s32, 3
      %p218 = por %p216, %p217
      %p219 = scmp.ne.s32.totalorder %s208, %s209
      %p220 = scmp.eq.s32.totalorder %s32, 0
      %p221 = por %p219, %p220
      %p222 = scmp.ne.s32.totalorder %s208, %s209
      %p223 = scmp.eq.s32.totalorder %s33, 3
      %p224 = por %p222, %p223
      %p226 = scmp.ne.s32.totalorder %s209, %s225
      %p227 = scmp.eq.s32.totalorder %s33, 0
      %p228 = por %p226, %p227
      %s229 = ssub.s32 %s35, %s42
      %p230 = scmp.eq.s32.totalorder %s229, 0
      %s232 = sadd.s32 %s231, 1
      %s233 = scalar_select %p230, %s231, %s232
      %p236 = pneg %p230
      %p237 = scmp.eq.s32.totalorder %s27, 3
      %p238 = por %p236, %p237
      %p239 = scmp.ne.s32.totalorder %s231, %s234
      %p240 = scmp.eq.s32.totalorder %s27, 0
      %p241 = por %p239, %p240
      %p242 = scmp.ne.s32.totalorder %s231, %s234
      %p243 = scmp.eq.s32.totalorder %s32, 3
      %p244 = por %p242, %p243
      %p245 = scmp.ne.s32.totalorder %s234, %s235
      %p246 = scmp.eq.s32.totalorder %s32, 0
      %p247 = por %p245, %p246
      %p248 = scmp.ne.s32.totalorder %s234, %s235
      %p249 = scmp.eq.s32.totalorder %s33, 3
      %p250 = por %p248, %p249
      %p252 = scmp.ne.s32.totalorder %s235, %s251
      %p253 = scmp.eq.s32.totalorder %s33, 0
      %p254 = por %p252, %p253
      %s255 = ssub.s32 %s35, %s42
      %p256 = scmp.eq.s32.totalorder %s255, 0
      %s258 = sadd.s32 %s257, 1
      %s259 = scalar_select %p256, %s257, %s258
      %p262 = pneg %p256
      %p263 = scmp.eq.s32.totalorder %s27, 3
      %p264 = por %p262, %p263
      %p265 = scmp.ne.s32.totalorder %s257, %s260
      %p266 = scmp.eq.s32.totalorder %s27, 0
      %p267 = por %p265, %p266
      %p268 = scmp.ne.s32.totalorder %s257, %s260
      %p269 = scmp.eq.s32.totalorder %s32, 3
      %p270 = por %p268, %p269
      %p271 = scmp.ne.s32.totalorder %s260, %s261
      %p272 = scmp.eq.s32.totalorder %s32, 0
      %p273 = por %p271, %p272
      %p274 = scmp.ne.s32.totalorder %s260, %s261
      %p275 = scmp.eq.s32.totalorder %s33, 3
      %p276 = por %p274, %p275
      %p278 = scmp.ne.s32.totalorder %s261, %s277
      %p279 = scmp.eq.s32.totalorder %s33, 0
      %p280 = por %p278, %p279
      %s281 = ssub.s32 %s35, %s42
      %p282 = scmp.eq.s32.totalorder %s281, 0
      %s284 = sadd.s32 %s283, 1
      %s285 = scalar_select %p282, %s283, %s284
      %p288 = pneg %p282
      %p289 = scmp.eq.s32.totalorder %s27, 3
      %p290 = por %p288, %p289
      %p291 = scmp.ne.s32.totalorder %s283, %s286
      %p292 = scmp.eq.s32.totalorder %s27, 0
      %p293 = por %p291, %p292
      %p294 = scmp.ne.s32.totalorder %s283, %s286
      %p295 = scmp.eq.s32.totalorder %s32, 3
      %p296 = por %p294, %p295
      %p297 = scmp.ne.s32.totalorder %s286, %s287
      %p298 = scmp.eq.s32.totalorder %s32, 0
      %p299 = por %p297, %p298
      %p300 = scmp.ne.s32.totalorder %s286, %s287
      %p301 = scmp.eq.s32.totalorder %s33, 3
      %p302 = por %p300, %p301
      %p304 = scmp.ne.s32.totalorder %s287, %s303
      %p305 = scmp.eq.s32.totalorder %s33, 0
      %p306 = por %p304, %p305
      %s307 = ssub.s32 %s35, %s42
      %p308 = scmp.eq.s32.totalorder %s307, 0
      %s310 = sadd.s32 %s309, 1
      %s311 = scalar_select %p308, %s309, %s310
      %p314 = pneg %p308
      %p315 = scmp.eq.s32.totalorder %s27, 3
      %p316 = por %p314, %p315
      %p317 = scmp.ne.s32.totalorder %s309, %s312
      %p318 = scmp.eq.s32.totalorder %s27, 0
      %p319 = por %p317, %p318
      %p320 = scmp.ne.s32.totalorder %s309, %s312
      %p321 = scmp.eq.s32.totalorder %s32, 3
      %p322 = por %p320, %p321
      %p323 = scmp.ne.s32.totalorder %s312, %s313
      %p324 = scmp.eq.s32.totalorder %s32, 0
      %p325 = por %p323, %p324
      %p326 = scmp.ne.s32.totalorder %s312, %s313
      %p327 = scmp.eq.s32.totalorder %s33, 3
      %p328 = por %p326, %p327
      %p330 = scmp.ne.s32.totalorder %s313, %s329
      %p331 = scmp.eq.s32.totalorder %s33, 0
      %p332 = por %p330, %p331
      %s333 = ssub.s32 %s35, %s42
      %p334 = scmp.eq.s32.totalorder %s333, 0
      %s336 = sadd.s32 %s335, 1
      %s337 = scalar_select %p334, %s335, %s336
      %p340 = pneg %p334
      %p341 = scmp.eq.s32.totalorder %s27, 3
      %p342 = por %p340, %p341
      %p343 = scmp.ne.s32.totalorder %s335, %s338
      %p344 = scmp.eq.s32.totalorder %s27, 0
      %p345 = por %p343, %p344
      %p346 = scmp.ne.s32.totalorder %s335, %s338
      %p347 = scmp.eq.s32.totalorder %s32, 3
      %p348 = por %p346, %p347
      %p349 = scmp.ne.s32.totalorder %s338, %s339
      %p350 = scmp.eq.s32.totalorder %s32, 0
      %p351 = por %p349, %p350
      %p352 = scmp.ne.s32.totalorder %s338, %s339
      %p353 = scmp.eq.s32.totalorder %s33, 3
      %p354 = por %p352, %p353
      %p356 = scmp.ne.s32.totalorder %s339, %s355
      %p357 = scmp.eq.s32.totalorder %s33, 0
      %p358 = por %p356, %p357
      %s359 = ssub.s32 %s35, %s42
      %p360 = scmp.eq.s32.totalorder %s359, 0
      %s362 = sadd.s32 %s361, 1
      %s363 = scalar_select %p360, %s361, %s362
      %p366 = pneg %p360
      %p367 = scmp.eq.s32.totalorder %s27, 3
      %p368 = por %p366, %p367
      %p369 = scmp.ne.s32.totalorder %s361, %s364
      %p370 = scmp.eq.s32.totalorder %s27, 0
      %p371 = por %p369, %p370
      %p372 = scmp.ne.s32.totalorder %s361, %s364
      %p373 = scmp.eq.s32.totalorder %s32, 3
      %p374 = por %p372, %p373
      %p375 = scmp.ne.s32.totalorder %s364, %s365
      %p376 = scmp.eq.s32.totalorder %s32, 0
      %p377 = por %p375, %p376
      %p378 = scmp.ne.s32.totalorder %s364, %s365
      %p379 = scmp.eq.s32.totalorder %s33, 3
      %p380 = por %p378, %p379
      %p382 = scmp.ne.s32.totalorder %s365, %s381
      %p383 = scmp.eq.s32.totalorder %s33, 0
      %p384 = por %p382, %p383
      %s385 = ssub.s32 %s35, %s42
      %p386 = scmp.eq.s32.totalorder %s385, 0
      %s388 = sadd.s32 %s387, 1
      %s389 = scalar_select %p386, %s387, %s388
      %p392 = pneg %p386
      %p393 = scmp.eq.s32.totalorder %s27, 3
      %p394 = por %p392, %p393
      %p395 = scmp.ne.s32.totalorder %s387, %s390
      %p396 = scmp.eq.s32.totalorder %s27, 0
      %p397 = por %p395, %p396
      %p398 = scmp.ne.s32.totalorder %s387, %s390
      %p399 = scmp.eq.s32.totalorder %s32, 3
      %p400 = por %p398, %p399
      %p401 = scmp.ne.s32.totalorder %s390, %s391
      %p402 = scmp.eq.s32.totalorder %s32, 0
      %p403 = por %p401, %p402
      %p404 = scmp.ne.s32.totalorder %s390, %s391
      %p405 = scmp.eq.s32.totalorder %s33, 3
      %p406 = por %p404, %p405
      %p408 = scmp.ne.s32.totalorder %s391, %s407
      %p409 = scmp.eq.s32.totalorder %s33, 0
      %p410 = por %p408, %p409
      %s411 = ssub.s32 %s35, %s42
      %p412 = scmp.eq.s32.totalorder %s411, 0
      %s414 = sadd.s32 %s413, 1
      %s415 = scalar_select %p412, %s413, %s414
      %p418 = pneg %p412
      %p419 = scmp.eq.s32.totalorder %s27, 3
      %p420 = por %p418, %p419
      %p421 = scmp.ne.s32.totalorder %s413, %s416
      %p422 = scmp.eq.s32.totalorder %s27, 0
      %p423 = por %p421, %p422
      %p424 = scmp.ne.s32.totalorder %s413, %s416
      %p425 = scmp.eq.s32.totalorder %s32, 3
      %p426 = por %p424, %p425
      %p427 = scmp.ne.s32.totalorder %s416, %s417
      %p428 = scmp.eq.s32.totalorder %s32, 0
      %p429 = por %p427, %p428
      %p430 = scmp.ne.s32.totalorder %s416, %s417
      %p431 = scmp.eq.s32.totalorder %s33, 3
      %p432 = por %p430, %p431
      %p434 = scmp.ne.s32.totalorder %s417, %s433
      %p435 = scmp.eq.s32.totalorder %s33, 0
      %p436 = por %p434, %p435
      %s437 = ssub.s32 %s35, %s42
      %p438 = scmp.eq.s32.totalorder %s437, 0
      %s440 = sadd.s32 %s439, 1
      %s441 = scalar_select %p438, %s439, %s440
      %p444 = pneg %p438
      %p445 = scmp.eq.s32.totalorder %s27, 3
      %p446 = por %p444, %p445
      %p447 = scmp.ne.s32.totalorder %s439, %s442
      %p448 = scmp.eq.s32.totalorder %s27, 0
      %p449 = por %p447, %p448
      %p450 = scmp.ne.s32.totalorder %s439, %s442
      %p451 = scmp.eq.s32.totalorder %s32, 3
      %p452 = por %p450, %p451
      %p453 = scmp.ne.s32.totalorder %s442, %s443
      %p454 = scmp.eq.s32.totalorder %s32, 0
      %p455 = por %p453, %p454
      %p456 = scmp.ne.s32.totalorder %s442, %s443
      %p457 = scmp.eq.s32.totalorder %s33, 3
      %p458 = por %p456, %p457
      %p460 = scmp.ne.s32.totalorder %s443, %s459
      %p461 = scmp.eq.s32.totalorder %s33, 0
      %p462 = por %p460, %p461
      %s463 = ssub.s32 %s35, %s42
      %p464 = scmp.eq.s32.totalorder %s463, 0
      %s466 = sadd.s32 %s465, 1
      %s467 = scalar_select %p464, %s465, %s466
      %p470 = pneg %p464
      %p471 = scmp.eq.s32.totalorder %s27, 3
      %p472 = por %p470, %p471
      %p473 = scmp.ne.s32.totalorder %s465, %s468
      %p474 = scmp.eq.s32.totalorder %s27, 0
      %p475 = por %p473, %p474
      %p476 = scmp.ne.s32.totalorder %s465, %s468
      %p477 = scmp.eq.s32.totalorder %s32, 3
      %p478 = por %p476, %p477
      %p479 = scmp.ne.s32.totalorder %s468, %s469
      %p480 = scmp.eq.s32.totalorder %s32, 0
      %p481 = por %p479, %p480
      %p482 = scmp.ne.s32.totalorder %s468, %s469
      %p483 = scmp.eq.s32.totalorder %s33, 3
      %p484 = por %p482, %p483
      %p486 = scmp.ne.s32.totalorder %s469, %s485
      %p487 = scmp.eq.s32.totalorder %s33, 0
      %p488 = por %p486, %p487
      %s489 = ssub.s32 %s35, %s42
      %p490 = scmp.eq.s32.totalorder %s489, 0
      %s492 = sadd.s32 %s491, 1
      %s493 = scalar_select %p490, %s491, %s492
      %p496 = pneg %p490
      %p497 = scmp.eq.s32.totalorder %s27, 3
      %p498 = por %p496, %p497
      %p499 = scmp.ne.s32.totalorder %s491, %s494
      %p500 = scmp.eq.s32.totalorder %s27, 0
      %p501 = por %p499, %p500
      %p502 = scmp.ne.s32.totalorder %s491, %s494
      %p503 = scmp.eq.s32.totalorder %s32, 3
      %p504 = por %p502, %p503
      %p505 = scmp.ne.s32.totalorder %s494, %s495
      %p506 = scmp.eq.s32.totalorder %s32, 0
      %p507 = por %p505, %p506
      %p508 = scmp.ne.s32.totalorder %s494, %s495
      %p509 = scmp.eq.s32.totalorder %s33, 3
      %p510 = por %p508, %p509
      %p512 = scmp.ne.s32.totalorder %s495, %s511
      %p513 = scmp.eq.s32.totalorder %s33, 0
      %p514 = por %p512, %p513
      %s515 = ssub.s32 %s34, %s46
      %p516 = scmp.eq.s32.totalorder %s515, 0
      %s518 = sadd.s32 %s517, 1
      %s519 = scalar_select %p516, %s517, %s518
      %p522 = pneg %p516
      %p523 = scmp.eq.s32.totalorder %s27, 3
      %p524 = por %p522, %p523
      %p525 = scmp.ne.s32.totalorder %s517, %s520
      %p526 = scmp.eq.s32.totalorder %s27, 0
      %p527 = por %p525, %p526
      %p528 = scmp.ne.s32.totalorder %s517, %s520
      %p529 = scmp.eq.s32.totalorder %s32, 3
      %p530 = por %p528, %p529
      %p531 = scmp.ne.s32.totalorder %s520, %s521
      %p532 = scmp.eq.s32.totalorder %s32, 0
      %p533 = por %p531, %p532
      %p534 = scmp.ne.s32.totalorder %s520, %s521
      %p535 = scmp.eq.s32.totalorder %s33, 3
      %p536 = por %p534, %p535
      %p538 = scmp.ne.s32.totalorder %s521, %s537
      %p539 = scmp.eq.s32.totalorder %s33, 0
      %p540 = por %p538, %p539
      %p541 = scmp.le.s32.totalorder 1, %s27
      %p542 = scmp.lt.s32.totalorder %s27, 5
      %p543 = pnand %p541, %p542
      %p544 = pneg %p543
      // Predicated region
      $region9: #{tpu_custom_call.1} parent=5 // pred_check
        _
      $region10: #{tpu_custom_call.1} parent=5 // pred_check_branch
        %546 = sbr.rel (%p543) target = $region12
      $region11: #{tpu_custom_call.1} parent=5 // pred_region
        %s547 = ssub.s32 %s27, 1
      $region12: #{tpu_custom_call.1} parent=5 // pred_fallthru
        _
      %p548 = scmp.lt.s32.totalorder %s27, 4
      // Predicated region
      $region13: #{tpu_custom_call.1} parent=5 // pred_check
        %p549 = pneg %p548
      $region14: #{tpu_custom_call.1} parent=5 // pred_check_branch
        %551 = sbr.rel (%p549) target = $region16
      $region15: #{tpu_custom_call.1} parent=5 // pred_region
        // Predicated region
        $region17: #{tpu_custom_call.1} parent=15 // pred_check
          %p552 = pneg %p59
        $region18: #{tpu_custom_call.1} parent=15 // pred_check_branch
          %554 = sbr.rel (%p552) target = $region20
        $region19: #{tpu_custom_call.1} parent=15 // pred_region
          %p555 = scmp.lt.s32.totalorder %s34, 1
          %s556 = scalar_select %p555, %s34, 1
          %s557 = smul.addr %s556, 8
          %s558 = scalar_lea.vmem %s0, %s557
        $region20: #{tpu_custom_call.1} parent=15 // pred_fallthru
          _
        // Predicated region
        $region21: #{tpu_custom_call.1} parent=15 // pred_check
          %p559 = pneg %p85
        $region22: #{tpu_custom_call.1} parent=15 // pred_check_branch
          %561 = sbr.rel (%p559) target = $region24
        $region23: #{tpu_custom_call.1} parent=15 // pred_region
          %p562 = scmp.lt.s32.totalorder %s34, 1
          %s563 = scalar_select %p562, %s34, 1
          %s564 = smul.addr %s563, 8
          %s565 = scalar_lea.vmem %s1, %s564
        $region24: #{tpu_custom_call.1} parent=15 // pred_fallthru
          _
        // Predicated region
        $region25: #{tpu_custom_call.1} parent=15 // pred_check
          %p566 = pneg %p111
        $region26: #{tpu_custom_call.1} parent=15 // pred_check_branch
          %568 = sbr.rel (%p566) target = $region28
        $region27: #{tpu_custom_call.1} parent=15 // pred_region
          %p569 = scmp.lt.s32.totalorder %s35, 1
          %s570 = scalar_select %p569, %s35, 1
          %s571 = scalar_lea.vmem %s2, %s570
        $region28: #{tpu_custom_call.1} parent=15 // pred_fallthru
          _
        // Predicated region
        $region29: #{tpu_custom_call.1} parent=15 // pred_check
          %p572 = pneg %p137
        $region30: #{tpu_custom_call.1} parent=15 // pred_check_branch
          %574 = sbr.rel (%p572) target = $region32
        $region31: #{tpu_custom_call.1} parent=15 // pred_region
          %p575 = scmp.lt.s32.totalorder %s35, 1
          %s576 = scalar_select %p575, %s35, 1
          %s577 = scalar_lea.vmem %s3, %s576
        $region32: #{tpu_custom_call.1} parent=15 // pred_fallthru
          _
        // Predicated region
        $region33: #{tpu_custom_call.1} parent=15 // pred_check
          %p578 = pneg %p163
        $region34: #{tpu_custom_call.1} parent=15 // pred_check_branch
          %580 = sbr.rel (%p578) target = $region36
        $region35: #{tpu_custom_call.1} parent=15 // pred_region
          %p581 = scmp.lt.s32.totalorder %s35, 1
          %s582 = scalar_select %p581, %s35, 1
          %s583 = scalar_lea.vmem %s4, %s582
        $region36: #{tpu_custom_call.1} parent=15 // pred_fallthru
          _
        // Predicated region
        $region37: #{tpu_custom_call.1} parent=15 // pred_check
          %p584 = pneg %p189
        $region38: #{tpu_custom_call.1} parent=15 // pred_check_branch
          %586 = sbr.rel (%p584) target = $region40
        $region39: #{tpu_custom_call.1} parent=15 // pred_region
          %p587 = scmp.lt.s32.totalorder %s35, 1
          %s588 = scalar_select %p587, %s35, 1
          %s589 = scalar_lea.vmem %s5, %s588
        $region40: #{tpu_custom_call.1} parent=15 // pred_fallthru
          _
        // Predicated region
        $region41: #{tpu_custom_call.1} parent=15 // pred_check
          %p590 = pneg %p215
        $region42: #{tpu_custom_call.1} parent=15 // pred_check_branch
          %592 = sbr.rel (%p590) target = $region44
        $region43: #{tpu_custom_call.1} parent=15 // pred_region
          %p593 = scmp.lt.s32.totalorder %s35, 1
          %s594 = scalar_select %p593, %s35, 1
          %s595 = smul.addr %s594, 4
          %s596 = smul.addr %s595, 4
          %s597 = scalar_lea.vmem %s6, %s596
        $region44: #{tpu_custom_call.1} parent=15 // pred_fallthru
          _
        // Predicated region
        $region45: #{tpu_custom_call.1} parent=15 // pred_check
          %p598 = pneg %p241
        $region46: #{tpu_custom_call.1} parent=15 // pred_check_branch
          %600 = sbr.rel (%p598) target = $region48
        $region47: #{tpu_custom_call.1} parent=15 // pred_region
          %p601 = scmp.lt.s32.totalorder %s35, 1
          %s602 = scalar_select %p601, %s35, 1
          %s603 = scalar_lea.vmem %s7, %s602
        $region48: #{tpu_custom_call.1} parent=15 // pred_fallthru
          _
        // Predicated region
        $region49: #{tpu_custom_call.1} parent=15 // pred_check
          %p604 = pneg %p267
        $region50: #{tpu_custom_call.1} parent=15 // pred_check_branch
          %606 = sbr.rel (%p604) target = $region52
        $region51: #{tpu_custom_call.1} parent=15 // pred_region
          %p607 = scmp.lt.s32.totalorder %s35, 1
          %s608 = scalar_select %p607, %s35, 1
          %s609 = smul.addr %s608, 4
          %s610 = smul.addr %s609, 4
          %s611 = scalar_lea.vmem %s8, %s610
        $region52: #{tpu_custom_call.1} parent=15 // pred_fallthru
          _
        // Predicated region
        $region53: #{tpu_custom_call.1} parent=15 // pred_check
          %p612 = pneg %p293
        $region54: #{tpu_custom_call.1} parent=15 // pred_check_branch
          %614 = sbr.rel (%p612) target = $region56
        $region55: #{tpu_custom_call.1} parent=15 // pred_region
          %p615 = scmp.lt.s32.totalorder %s35, 1
          %s616 = scalar_select %p615, %s35, 1
          %s617 = scalar_lea.vmem %s9, %s616
        $region56: #{tpu_custom_call.1} parent=15 // pred_fallthru
          _
        // Predicated region
        $region57: #{tpu_custom_call.1} parent=15 // pred_check
          %p618 = pneg %p319
        $region58: #{tpu_custom_call.1} parent=15 // pred_check_branch
          %620 = sbr.rel (%p618) target = $region60
        $region59: #{tpu_custom_call.1} parent=15 // pred_region
          %p621 = scmp.lt.s32.totalorder %s35, 1
          %s622 = scalar_select %p621, %s35, 1
          %s623 = smul.addr %s622, 4
          %s624 = smul.addr %s623, 4
          %s625 = scalar_lea.vmem %s10, %s624
        $region60: #{tpu_custom_call.1} parent=15 // pred_fallthru
          _
        // Predicated region
        $region61: #{tpu_custom_call.1} parent=15 // pred_check
          %p626 = pneg %p345
        $region62: #{tpu_custom_call.1} parent=15 // pred_check_branch
          %628 = sbr.rel (%p626) target = $region64
        $region63: #{tpu_custom_call.1} parent=15 // pred_region
          %p629 = scmp.lt.s32.totalorder %s35, 1
          %s630 = scalar_select %p629, %s35, 1
          %s631 = scalar_lea.vmem %s11, %s630
        $region64: #{tpu_custom_call.1} parent=15 // pred_fallthru
          _
        // Predicated region
        $region65: #{tpu_custom_call.1} parent=15 // pred_check
          %p632 = pneg %p371
        $region66: #{tpu_custom_call.1} parent=15 // pred_check_branch
          %634 = sbr.rel (%p632) target = $region68
        $region67: #{tpu_custom_call.1} parent=15 // pred_region
          %p635 = scmp.lt.s32.totalorder %s35, 1
          %s636 = scalar_select %p635, %s35, 1
          %s637 = scalar_lea.vmem %s12, %s636
        $region68: #{tpu_custom_call.1} parent=15 // pred_fallthru
          _
        // Predicated region
        $region69: #{tpu_custom_call.1} parent=15 // pred_check
          %p638 = pneg %p397
        $region70: #{tpu_custom_call.1} parent=15 // pred_check_branch
          %640 = sbr.rel (%p638) target = $region72
        $region71: #{tpu_custom_call.1} parent=15 // pred_region
          %p641 = scmp.lt.s32.totalorder %s35, 1
          %s642 = scalar_select %p641, %s35, 1
          %s643 = scalar_lea.vmem %s13, %s642
        $region72: #{tpu_custom_call.1} parent=15 // pred_fallthru
          _
        // Predicated region
        $region73: #{tpu_custom_call.1} parent=15 // pred_check
          %p644 = pneg %p423
        $region74: #{tpu_custom_call.1} parent=15 // pred_check_branch
          %646 = sbr.rel (%p644) target = $region76
        $region75: #{tpu_custom_call.1} parent=15 // pred_region
          %p647 = scmp.lt.s32.totalorder %s35, 1
          %s648 = scalar_select %p647, %s35, 1
          %s649 = smul.addr %s648, 4
          %s650 = smul.addr %s649, 4
          %s651 = scalar_lea.vmem %s14, %s650
        $region76: #{tpu_custom_call.1} parent=15 // pred_fallthru
          _
        // Predicated region
        $region77: #{tpu_custom_call.1} parent=15 // pred_check
          %p652 = pneg %p449
        $region78: #{tpu_custom_call.1} parent=15 // pred_check_branch
          %654 = sbr.rel (%p652) target = $region80
        $region79: #{tpu_custom_call.1} parent=15 // pred_region
          %p655 = scmp.lt.s32.totalorder %s35, 1
          %s656 = scalar_select %p655, %s35, 1
          %s657 = scalar_lea.vmem %s15, %s656
        $region80: #{tpu_custom_call.1} parent=15 // pred_fallthru
          _
        // Predicated region
        $region81: #{tpu_custom_call.1} parent=15 // pred_check
          %p658 = pneg %p475
        $region82: #{tpu_custom_call.1} parent=15 // pred_check_branch
          %660 = sbr.rel (%p658) target = $region84
        $region83: #{tpu_custom_call.1} parent=15 // pred_region
          %p661 = scmp.lt.s32.totalorder %s35, 1
          %s662 = scalar_select %p661, %s35, 1
          %s663 = smul.addr %s662, 16
          %s664 = smul.addr %s663, 4
          %s665 = scalar_lea.vmem %s16, %s664
        $region84: #{tpu_custom_call.1} parent=15 // pred_fallthru
          _
        // Predicated region
        $region85: #{tpu_custom_call.1} parent=15 // pred_check
          %p666 = pneg %p501
        $region86: #{tpu_custom_call.1} parent=15 // pred_check_branch
          %668 = sbr.rel (%p666) target = $region88
        $region87: #{tpu_custom_call.1} parent=15 // pred_region
          %p669 = scmp.lt.s32.totalorder %s35, 1
          %s670 = scalar_select %p669, %s35, 1
          %s671 = scalar_lea.vmem %s17, %s670
        $region88: #{tpu_custom_call.1} parent=15 // pred_fallthru
          _
      $region16: #{tpu_custom_call.1} parent=5 // pred_fallthru
        _
      %p672 = scmp.le.s32.totalorder 1, %s27
      %p673 = scmp.lt.s32.totalorder %s27, 5
      %p674 = pnand %p672, %p673
      %p675 = pneg %p674
      // Predicated region
      $region89: #{tpu_custom_call.1} parent=5 // pred_check
        _
      $region90: #{tpu_custom_call.1} parent=5 // pred_check_branch
        %677 = sbr.rel (%p674) target = $region92
      $region91: #{tpu_custom_call.1} parent=5 // pred_region
        %s678 = ssub.s32 %s27, 1
        %p679 = scmp.lt.s32.totalorder %s36, 1
        %s680 = scalar_select %p679, %s36, 1
        %s681 = smul.addr %s680, 8
        %s682 = scalar_lea.vmem %s0, %s681
        %p683 = pneg %p65
        %p684 = pneg %p62
        %p685 = scmp.lt.s32.totalorder %s36, 1
        %s686 = scalar_select %p685, %s36, 1
        %s687 = smul.addr %s686, 8
        %s688 = scalar_lea.vmem %s1, %s687
        %p689 = pneg %p91
        %p690 = pneg %p88
        %p691 = scmp.lt.s32.totalorder %s37, 1
        %s692 = scalar_select %p691, %s37, 1
        %s693 = scalar_lea.vmem %s2, %s692
        %p694 = pneg %p117
        %p695 = pneg %p114
        %p696 = scmp.lt.s32.totalorder %s37, 1
        %s697 = scalar_select %p696, %s37, 1
        %s698 = scalar_lea.vmem %s3, %s697
        %p699 = pneg %p143
        %p700 = pneg %p140
        %p701 = scmp.lt.s32.totalorder %s37, 1
        %s702 = scalar_select %p701, %s37, 1
        %s703 = scalar_lea.vmem %s4, %s702
        %p704 = pneg %p169
        %p705 = pneg %p166
        %p706 = scmp.lt.s32.totalorder %s37, 1
        %s707 = scalar_select %p706, %s37, 1
        %s708 = scalar_lea.vmem %s5, %s707
        %p709 = pneg %p195
        %p710 = pneg %p192
        %p711 = scmp.lt.s32.totalorder %s37, 1
        %s712 = scalar_select %p711, %s37, 1
        %s713 = smul.addr %s712, 4
        %s714 = smul.addr %s713, 4
        %s715 = scalar_lea.vmem %s6, %s714
        %p716 = pneg %p221
        %p717 = pneg %p218
        %p718 = scmp.lt.s32.totalorder %s37, 1
        %s719 = scalar_select %p718, %s37, 1
        %s720 = scalar_lea.vmem %s7, %s719
        %p721 = pneg %p247
        %p722 = pneg %p244
        %p723 = scmp.lt.s32.totalorder %s37, 1
        %s724 = scalar_select %p723, %s37, 1
        %s725 = smul.addr %s724, 4
        %s726 = smul.addr %s725, 4
        %s727 = scalar_lea.vmem %s8, %s726
        %p728 = pneg %p273
        %p729 = pneg %p270
        %p730 = scmp.lt.s32.totalorder %s37, 1
        %s731 = scalar_select %p730, %s37, 1
        %s732 = scalar_lea.vmem %s9, %s731
        %p733 = pneg %p299
        %p734 = pneg %p296
        %p735 = scmp.lt.s32.totalorder %s37, 1
        %s736 = scalar_select %p735, %s37, 1
        %s737 = smul.addr %s736, 4
        %s738 = smul.addr %s737, 4
        %s739 = scalar_lea.vmem %s10, %s738
        %p740 = pneg %p325
        %p741 = pneg %p322
        %p742 = scmp.lt.s32.totalorder %s37, 1
        %s743 = scalar_select %p742, %s37, 1
        %s744 = scalar_lea.vmem %s11, %s743
        %p745 = pneg %p351
        %p746 = pneg %p348
        %p747 = scmp.lt.s32.totalorder %s37, 1
        %s748 = scalar_select %p747, %s37, 1
        %s749 = scalar_lea.vmem %s12, %s748
        %p750 = pneg %p377
        %p751 = pneg %p374
        %p752 = scmp.lt.s32.totalorder %s37, 1
        %s753 = scalar_select %p752, %s37, 1
        %s754 = scalar_lea.vmem %s13, %s753
        %p755 = pneg %p403
        %p756 = pneg %p400
        %p757 = scmp.lt.s32.totalorder %s37, 1
        %s758 = scalar_select %p757, %s37, 1
        %s759 = smul.addr %s758, 4
        %s760 = smul.addr %s759, 4
        %s761 = scalar_lea.vmem %s14, %s760
        %p762 = pneg %p429
        %p763 = pneg %p426
        %p764 = scmp.lt.s32.totalorder %s37, 1
        %s765 = scalar_select %p764, %s37, 1
        %s766 = scalar_lea.vmem %s15, %s765
        %p767 = pneg %p455
        %p768 = pneg %p452
        %p769 = scmp.lt.s32.totalorder %s37, 1
        %s770 = scalar_select %p769, %s37, 1
        %s771 = smul.addr %s770, 16
        %s772 = smul.addr %s771, 4
        %s773 = scalar_lea.vmem %s16, %s772
        %p774 = pneg %p481
        %p775 = pneg %p478
        %p776 = scmp.lt.s32.totalorder %s37, 1
        %s777 = scalar_select %p776, %s37, 1
        %s778 = scalar_lea.vmem %s17, %s777
        %p779 = pneg %p507
        %p780 = pneg %p504
        %p781 = pneg %p533
        %p782 = pneg %p530
        %s783 = sand.u32 %s520, 1
        %s784 = scalar_lea.sflag [#allocation4], %s783
        %s785 = sand.u32 %s520, 1
        %s786 = smul.addr %s785, 8
        %s787 = scalar_lea.vmem [#allocation3], %s786
        %p788 = scmp.lt.s32.totalorder %s36, 1
        %s789 = scalar_select %p788, %s36, 1
        %s790 = smul.addr %s789, 8
        %s791 = scalar_lea.vmem %s0, %s790
        %p792 = scmp.lt.s32.totalorder %s36, 1
        %s793 = scalar_select %p792, %s36, 1
        %s794 = smul.addr %s793, 8
        %s795 = scalar_lea.vmem %s1, %s794
        %p796 = scmp.lt.s32.totalorder %s37, 1
        %s797 = scalar_select %p796, %s37, 1
        %s798 = scalar_lea.vmem %s2, %s797
        %p799 = scmp.lt.s32.totalorder %s37, 1
        %s800 = scalar_select %p799, %s37, 1
        %s801 = scalar_lea.vmem %s3, %s800
        %p802 = scmp.lt.s32.totalorder %s37, 1
        %s803 = scalar_select %p802, %s37, 1
        %s804 = scalar_lea.vmem %s4, %s803
        %p805 = scmp.lt.s32.totalorder %s37, 1
        %s806 = scalar_select %p805, %s37, 1
        %s807 = scalar_lea.vmem %s5, %s806
        %p808 = scmp.lt.s32.totalorder %s37, 1
        %s809 = scalar_select %p808, %s37, 1
        %s810 = smul.addr %s809, 4
        %s811 = smul.addr %s810, 4
        %s812 = scalar_lea.vmem %s6, %s811
        %p813 = scmp.lt.s32.totalorder %s37, 1
        %s814 = scalar_select %p813, %s37, 1
        %s815 = scalar_lea.vmem %s7, %s814
        %p816 = scmp.lt.s32.totalorder %s37, 1
        %s817 = scalar_select %p816, %s37, 1
        %s818 = smul.addr %s817, 4
        %s819 = smul.addr %s818, 4
        %s820 = scalar_lea.vmem %s8, %s819
        %p821 = scmp.lt.s32.totalorder %s37, 1
        %s822 = scalar_select %p821, %s37, 1
        %s823 = scalar_lea.vmem %s9, %s822
        %p824 = scmp.lt.s32.totalorder %s37, 1
        %s825 = scalar_select %p824, %s37, 1
        %s826 = smul.addr %s825, 4
        %s827 = smul.addr %s826, 4
        %s828 = scalar_lea.vmem %s10, %s827
        %p829 = scmp.lt.s32.totalorder %s37, 1
        %s830 = scalar_select %p829, %s37, 1
        %s831 = scalar_lea.vmem %s11, %s830
        %p832 = scmp.lt.s32.totalorder %s37, 1
        %s833 = scalar_select %p832, %s37, 1
        %s834 = scalar_lea.vmem %s12, %s833
        %p835 = scmp.lt.s32.totalorder %s37, 1
        %s836 = scalar_select %p835, %s37, 1
        %s837 = scalar_lea.vmem %s13, %s836
        %p838 = scmp.lt.s32.totalorder %s37, 1
        %s839 = scalar_select %p838, %s37, 1
        %s840 = smul.addr %s839, 4
        %s841 = smul.addr %s840, 4
        %s842 = scalar_lea.vmem %s14, %s841
        %p843 = scmp.lt.s32.totalorder %s37, 1
        %s844 = scalar_select %p843, %s37, 1
        %s845 = scalar_lea.vmem %s15, %s844
        %p846 = scmp.lt.s32.totalorder %s37, 1
        %s847 = scalar_select %p846, %s37, 1
        %s848 = smul.addr %s847, 16
        %s849 = smul.addr %s848, 4
        %s850 = scalar_lea.vmem %s16, %s849
        %p851 = scmp.lt.s32.totalorder %s37, 1
        %s852 = scalar_select %p851, %s37, 1
        %s853 = scalar_lea.vmem %s17, %s852
        %p855 = scmp.eq.s32.totalorder %s37, 0
        // Predicated region
        $region93: #{tpu_custom_call.1} parent=91 // pred_check
          %p856 = pneg %p855
        $region94: #{tpu_custom_call.1} parent=91 // pred_check_branch
          %858 = sbr.rel (%p856) target = $region96
        $region95: #{tpu_custom_call.1} parent=91 // pred_region
          %v859 = vld [vmem:[%s791] sm:$0xff]
          %vm860 = vcmask 261120
          %861 = vst.msk [vmem:[#allocation2] sm:$0xff] %vm860, %v859
        $region96: #{tpu_custom_call.1} parent=91 // pred_fallthru
          _
        %v862 = vld [vmem:[#allocation2] sm:$0xff]
        %v863 = vld [vmem:[%s795] sm:$0xff]
        %v864 = vld [vmem:[%s798] sm:$0x1]
        %v865 = vld [vmem:[%s801] sm:$0x1]
        %vm866 = vcmask 261120
        %v867 = vsel %vm866, %v862, 0.0
        %868 = vadd.xlane.f32.xlu0 %v867
        %v869 = vpop.xlane.xlu0 %868
        %v870 = vrcp.pop 32.0
        %v871 = vmul.f32 %v869, %v870
        %v872 = vmul.f32 %v862, %v862
        %v873 = vsel %vm866, %v872, 0.0
        %874 = vadd.xlane.f32.xlu0 %v873
        %v875 = vpop.xlane.xlu0 %874
        %v876 = vmul.f32 %v875, %v870
        %v877 = vmul.f32 %v871, %v871
        %v878 = vsub.f32 %v876, %v877
        %v879 = vmax.f32 %v878, 0.0
        %v880 = vsub.f32 %v862, %v871
        %v881 = vadd.f32 %v879, 1e-05
        %v882 = vrsqrt.pop %v881
        %v883 = vmul.f32 %v880, %v882
        %v885 = vlaneseq
        %v886 = vshrl.u32 %v885, 7
        %v887 = vsub.s32 0, %v886
        %v888 = vrot.slane %v864, %v887
        %v890 = vmul.f32 %v883, %v888
        %v892 = vlaneseq
        %v893 = vshrl.u32 %v892, 7
        %v894 = vsub.s32 0, %v893
        %v895 = vrot.slane %v865, %v894
        %v897 = vadd.f32 %v890, %v895
        %v898 = vpack.c.bf16 %v897, %v897
        %v899 = vld [vmem:[%s804] sm:$0x1]
        %v900 = vld [vmem:[%s807] sm:$0x1]
        %v901 = vsel %vm866, %v863, 0.0
        %902 = vadd.xlane.f32.xlu0 %v901
        %v903 = vpop.xlane.xlu0 %902
        %v904 = vmul.f32 %v903, %v870
        %v905 = vmul.f32 %v863, %v863
        %v906 = vsel %vm866, %v905, 0.0
        %907 = vadd.xlane.f32.xlu0 %v906
        %v908 = vpop.xlane.xlu0 %907
        %v909 = vmul.f32 %v908, %v870
        %v910 = vmul.f32 %v904, %v904
        %v911 = vsub.f32 %v909, %v910
        %v912 = vmax.f32 %v911, 0.0
        %v913 = vsub.f32 %v863, %v904
        %v914 = vadd.f32 %v912, 1e-05
        %v915 = vrsqrt.pop %v914
        %v916 = vmul.f32 %v913, %v915
        %v918 = vlaneseq
        %v919 = vshrl.u32 %v918, 7
        %v920 = vsub.s32 0, %v919
        %v921 = vrot.slane %v899, %v920
        %v923 = vmul.f32 %v916, %v921
        %v925 = vlaneseq
        %v926 = vshrl.u32 %v925, 7
        %v927 = vsub.s32 0, %v926
        %v928 = vrot.slane %v900, %v927
        %v930 = vadd.f32 %v923, %v928
        %v931 = vpack.c.bf16 %v930, %v930
        %v932 = vld [vmem:[%s812] sm:$0xf]
        %v933 = vld [vmem:[%s812 + $0x4] sm:$0xf]
        %v934 = vld [vmem:[%s812 + $0x8] sm:$0xf]
        %v935 = vld [vmem:[%s812 + $0xc] sm:$0xf]
        %v936 = vld [vmem:[%s815] sm:$0x1]
        %v938 = vlaneseq
        %v939 = vshrl.u32 %v938, 7
        %v940 = vsub.s32 0, %v939
        %v941 = vrot.slane %v936, %v940
        %v947 = vunpack.c.l.b16 %v932
        %v948 = vunpack.c.l.b16 %v933
        %v949 = vunpack.c.l.b16 %v934
        %v950 = vunpack.c.l.b16 %v935
        %v951 = vpack.c.b16 %v948, %v947
        %v952 = vpack.c.b16 %v950, %v949
        %v956 = vsel %vm866, %v931, 0
        %958 = vmatprep.subr.bf16.mxu0 0
        %959 = vmatpush1.bf16.msra.mxu0 %v951
        %960 = vmatprep.subr.bf16.mxu0 0
        %961 = vmatpush1.bf16.msra.mxu0 %v952
        %962 = vmatprep.subr.bf16.mxu0 0
        %963 = vmatpush1.bf16.msra.mxu0 0
        %964 = vmatprep.subr.bf16.mxu0 0
        %965 = vmatpush1.bf16.msra.mxu0 0
        %966 = vmatprep.subr.bf16.mxu0 0
        %967 = vmatpush1.bf16.msra.mxu0 0
        %968 = vmatprep.subr.bf16.mxu0 0
        %969 = vmatpush1.bf16.msra.mxu0 0
        %970 = vmatprep.subr.bf16.mxu0 0
        %971 = vmatpush1.bf16.msra.mxu0 0
        %972 = vmatprep.subr.bf16.mxu0 0
        %973 = vmatpush1.bf16.msra.mxu0 0
        %974 = vmatprep.subr.bf16.mxu0 0
        %975 = vmatpush1.bf16.msra.mxu0 0
        %976 = vmatprep.subr.bf16.mxu0 0
        %977 = vmatpush1.bf16.msra.mxu0 0
        %978 = vmatprep.subr.bf16.mxu0 0
        %979 = vmatpush1.bf16.msra.mxu0 0
        %980 = vmatprep.subr.bf16.mxu0 0
        %981 = vmatpush1.bf16.msra.mxu0 0
        %982 = vmatprep.subr.bf16.mxu0 0
        %983 = vmatpush1.bf16.msra.mxu0 0
        %984 = vmatprep.subr.bf16.mxu0 0
        %985 = vmatpush1.bf16.msra.mxu0 0
        %986 = vmatprep.subr.bf16.mxu0 0
        %987 = vmatpush1.bf16.msra.mxu0 0
        %988 = vmatprep.subr.bf16.mxu0 0
        %989 = vmatpush1.bf16.msra.mxu0 0
        %990 = vmatprep.mubr.bf16.mxu0 0
        %991 = vmatmul.mubr.bf16.gmra.mrb[0].mxu0 %v956
        %v992 = vpop.f32.mrb[0].mxu0
        %v993 = vadd.f32 %v941, %v992
        %v994 = vpop.f32.mrb[0].mxu0
        %v995 = vpop.f32.mrb[0].mxu0
        %v996 = vpop.f32.mrb[0].mxu0
        %997 = vdwg.mxu0
        %v998 = vld [vmem:[%s820] sm:$0xf]
        %v999 = vld [vmem:[%s820 + $0x4] sm:$0xf]
        %v1000 = vld [vmem:[%s820 + $0x8] sm:$0xf]
        %v1001 = vld [vmem:[%s820 + $0xc] sm:$0xf]
        %v1002 = vld [vmem:[%s823] sm:$0x1]
        %v1004 = vlaneseq
        %v1005 = vshrl.u32 %v1004, 7
        %v1006 = vsub.s32 0, %v1005
        %v1007 = vrot.slane %v1002, %v1006
        %v1013 = vunpack.c.l.b16 %v998
        %v1014 = vunpack.c.l.b16 %v999
        %v1015 = vunpack.c.l.b16 %v1000
        %v1016 = vunpack.c.l.b16 %v1001
        %v1017 = vpack.c.b16 %v1014, %v1013
        %v1018 = vpack.c.b16 %v1016, %v1015
        %v1022 = vsel %vm866, %v898, 0
        %1024 = vmatprep.subr.bf16.mxu0 0
        %1025 = vmatpush1.bf16.msra.mxu0 %v1017
        %1026 = vmatprep.subr.bf16.mxu0 0
        %1027 = vmatpush1.bf16.msra.mxu0 %v1018
        %1028 = vmatprep.subr.bf16.mxu0 0
        %1029 = vmatpush1.bf16.msra.mxu0 0
        %1030 = vmatprep.subr.bf16.mxu0 0
        %1031 = vmatpush1.bf16.msra.mxu0 0
        %1032 = vmatprep.subr.bf16.mxu0 0
        %1033 = vmatpush1.bf16.msra.mxu0 0
        %1034 = vmatprep.subr.bf16.mxu0 0
        %1035 = vmatpush1.bf16.msra.mxu0 0
        %1036 = vmatprep.subr.bf16.mxu0 0
        %1037 = vmatpush1.bf16.msra.mxu0 0
        %1038 = vmatprep.subr.bf16.mxu0 0
        %1039 = vmatpush1.bf16.msra.mxu0 0
        %1040 = vmatprep.subr.bf16.mxu0 0
        %1041 = vmatpush1.bf16.msra.mxu0 0
        %1042 = vmatprep.subr.bf16.mxu0 0
        %1043 = vmatpush1.bf16.msra.mxu0 0
        %1044 = vmatprep.subr.bf16.mxu0 0
        %1045 = vmatpush1.bf16.msra.mxu0 0
        %1046 = vmatprep.subr.bf16.mxu0 0
        %1047 = vmatpush1.bf16.msra.mxu0 0
        %1048 = vmatprep.subr.bf16.mxu0 0
        %1049 = vmatpush1.bf16.msra.mxu0 0
        %1050 = vmatprep.subr.bf16.mxu0 0
        %1051 = vmatpush1.bf16.msra.mxu0 0
        %1052 = vmatprep.subr.bf16.mxu0 0
        %1053 = vmatpush1.bf16.msra.mxu0 0
        %1054 = vmatprep.subr.bf16.mxu0 0
        %1055 = vmatpush1.bf16.msra.mxu0 0
        %1056 = vmatprep.mubr.bf16.mxu0 0
        %1057 = vmatmul.mubr.bf16.gmra.mrb[0].mxu0 %v1022
        %v1058 = vpop.f32.mrb[0].mxu0
        %v1059 = vadd.f32 %v1007, %v1058
        %v1060 = vpop.f32.mrb[0].mxu0
        %v1061 = vpop.f32.mrb[0].mxu0
        %v1062 = vpop.f32.mrb[0].mxu0
        %1063 = vdwg.mxu0
        %v1064 = vld [vmem:[%s828] sm:$0xf]
        %v1065 = vld [vmem:[%s828 + $0x4] sm:$0xf]
        %v1066 = vld [vmem:[%s828 + $0x8] sm:$0xf]
        %v1067 = vld [vmem:[%s828 + $0xc] sm:$0xf]
        %v1068 = vld [vmem:[%s831] sm:$0x1]
        %v1070 = vlaneseq
        %v1071 = vshrl.u32 %v1070, 7
        %v1072 = vsub.s32 0, %v1071
        %v1073 = vrot.slane %v1068, %v1072
        %v1079 = vunpack.c.l.b16 %v1064
        %v1080 = vunpack.c.l.b16 %v1065
        %v1081 = vunpack.c.l.b16 %v1066
        %v1082 = vunpack.c.l.b16 %v1067
        %v1083 = vpack.c.b16 %v1080, %v1079
        %v1084 = vpack.c.b16 %v1082, %v1081
        %1087 = vmatprep.subr.bf16.mxu0 0
        %1088 = vmatpush1.bf16.msra.mxu0 %v1083
        %1089 = vmatprep.subr.bf16.mxu0 0
        %1090 = vmatpush1.bf16.msra.mxu0 %v1084
        %1091 = vmatprep.subr.bf16.mxu0 0
        %1092 = vmatpush1.bf16.msra.mxu0 0
        %1093 = vmatprep.subr.bf16.mxu0 0
        %1094 = vmatpush1.bf16.msra.mxu0 0
        %1095 = vmatprep.subr.bf16.mxu0 0
        %1096 = vmatpush1.bf16.msra.mxu0 0
        %1097 = vmatprep.subr.bf16.mxu0 0
        %1098 = vmatpush1.bf16.msra.mxu0 0
        %1099 = vmatprep.subr.bf16.mxu0 0
        %1100 = vmatpush1.bf16.msra.mxu0 0
        %1101 = vmatprep.subr.bf16.mxu0 0
        %1102 = vmatpush1.bf16.msra.mxu0 0
        %1103 = vmatprep.subr.bf16.mxu0 0
        %1104 = vmatpush1.bf16.msra.mxu0 0
        %1105 = vmatprep.subr.bf16.mxu0 0
        %1106 = vmatpush1.bf16.msra.mxu0 0
        %1107 = vmatprep.subr.bf16.mxu0 0
        %1108 = vmatpush1.bf16.msra.mxu0 0
        %1109 = vmatprep.subr.bf16.mxu0 0
        %1110 = vmatpush1.bf16.msra.mxu0 0
        %1111 = vmatprep.subr.bf16.mxu0 0
        %1112 = vmatpush1.bf16.msra.mxu0 0
        %1113 = vmatprep.subr.bf16.mxu0 0
        %1114 = vmatpush1.bf16.msra.mxu0 0
        %1115 = vmatprep.subr.bf16.mxu0 0
        %1116 = vmatpush1.bf16.msra.mxu0 0
        %1117 = vmatprep.subr.bf16.mxu0 0
        %1118 = vmatpush1.bf16.msra.mxu0 0
        %1119 = vmatprep.mubr.bf16.mxu0 0
        %1120 = vmatmul.mubr.bf16.gmra.mrb[0].mxu0 %v1022
        %v1121 = vpop.f32.mrb[0].mxu0
        %v1122 = vadd.f32 %v1073, %v1121
        %v1123 = vpop.f32.mrb[0].mxu0
        %v1124 = vpop.f32.mrb[0].mxu0
        %v1125 = vpop.f32.mrb[0].mxu0
        %1126 = vdwg.mxu0
        %v1127 = vmul.f32 %v993, 0.35355338
        %v1128 = vpack.c.bf16 %v1127, %v1127
        %v1129 = vpack.c.bf16 %v1059, %v1059
        %v1130 = vpack.c.bf16 %v1122, %v1122
        %vm1131 = vcmask 64512
        %v1133 = vsel %vm1131, %v1128, 0
        %v1136 = vsel %vm1131, %v1129, 0
        %1138 = vmatprep.subr.bf16.mxu0 0
        %1139 = vmatpush1.bf16.xpose.msra.mxu0 %v1136
        %1140 = vmatprep.subr.bf16.mxu0 0
        %1141 = vmatpush1.bf16.xpose.msra.mxu0 0
        %1142 = vmatprep.subr.bf16.mxu0 0
        %1143 = vmatpush1.bf16.xpose.msra.mxu0 0
        %1144 = vmatprep.subr.bf16.mxu0 0
        %1145 = vmatpush1.bf16.xpose.msra.mxu0 0
        %1146 = vmatprep.subr.bf16.mxu0 0
        %1147 = vmatpush1.bf16.xpose.msra.mxu0 0
        %1148 = vmatprep.subr.bf16.mxu0 0
        %1149 = vmatpush1.bf16.xpose.msra.mxu0 0
        %1150 = vmatprep.subr.bf16.mxu0 0
        %1151 = vmatpush1.bf16.xpose.msra.mxu0 0
        %1152 = vmatprep.subr.bf16.mxu0 0
        %1153 = vmatpush1.bf16.xpose.msra.mxu0 0
        %1154 = vmatprep.subr.bf16.mxu0 0
        %1155 = vmatpush1.bf16.xpose.msra.mxu0 0
        %1156 = vmatprep.subr.bf16.mxu0 0
        %1157 = vmatpush1.bf16.xpose.msra.mxu0 0
        %1158 = vmatprep.subr.bf16.mxu0 0
        %1159 = vmatpush1.bf16.xpose.msra.mxu0 0
        %1160 = vmatprep.subr.bf16.mxu0 0
        %1161 = vmatpush1.bf16.xpose.msra.mxu0 0
        %1162 = vmatprep.subr.bf16.mxu0 0
        %1163 = vmatpush1.bf16.xpose.msra.mxu0 0
        %1164 = vmatprep.subr.bf16.mxu0 0
        %1165 = vmatpush1.bf16.xpose.msra.mxu0 0
        %1166 = vmatprep.subr.bf16.mxu0 0
        %1167 = vmatpush1.bf16.xpose.msra.mxu0 0
        %1168 = vmatprep.subr.bf16.mxu0 0
        %1169 = vmatpush1.bf16.xpose.msra.mxu0 0
        %1170 = vmatprep.mubr.bf16.mxu0 0
        %1171 = vmatmul.mubr.bf16.gmra.mrb[0].mxu0 %v1133
        %v1172 = vpop.f32.mrb[0].mxu0
        %v1173 = vadd.f32 0.0, %v1172
        %v1174 = vpop.f32.mrb[0].mxu0
        %v1175 = vpop.f32.mrb[0].mxu0
        %v1176 = vpop.f32.mrb[0].mxu0
        %1177 = vdwg.mxu0
        %v1178 = vsel %vm1131, %v1173, -inf
        %1179 = vmax.xlane.f32.xlu0 %v1178
        %v1180 = vpop.xlane.xlu0 %1179
        %v1181 = vsub.f32 %v1173, %v1180
        %v1182 = vmul.f32 %v1181, 1.442695
        %v1183 = vpow.pop %v1182
        %v1184 = vsel %vm1131, %v1183, 0.0
        %1185 = vadd.xlane.f32.xlu0 %v1184
        %v1186 = vpop.xlane.xlu0 %1185
        %v1187 = vrcp.pop %v1186
        %v1188 = vmul.f32 %v1183, %v1187
        %v1189 = vpack.c.bf16 %v1188, %v1188
        %v1191 = vsel %vm1131, %v1189, 0
        %vm1193 = vcmask 1043456
        %v1195 = vsel %vm1193, %v1130, 0
        %1197 = vmatprep.subr.bf16.mxu0 0
        %1198 = vmatpush1.bf16.msra.mxu0 %v1195
        %1199 = vmatprep.subr.bf16.mxu0 0
        %1200 = vmatpush1.bf16.msra.mxu0 0
        %1201 = vmatprep.subr.bf16.mxu0 0
        %1202 = vmatpush1.bf16.msra.mxu0 0
        %1203 = vmatprep.subr.bf16.mxu0 0
        %1204 = vmatpush1.bf16.msra.mxu0 0
        %1205 = vmatprep.subr.bf16.mxu0 0
        %1206 = vmatpush1.bf16.msra.mxu0 0
        %1207 = vmatprep.subr.bf16.mxu0 0
        %1208 = vmatpush1.bf16.msra.mxu0 0
        %1209 = vmatprep.subr.bf16.mxu0 0
        %1210 = vmatpush1.bf16.msra.mxu0 0
        %1211 = vmatprep.subr.bf16.mxu0 0
        %1212 = vmatpush1.bf16.msra.mxu0 0
        %1213 = vmatprep.subr.bf16.mxu0 0
        %1214 = vmatpush1.bf16.msra.mxu0 0
        %1215 = vmatprep.subr.bf16.mxu0 0
        %1216 = vmatpush1.bf16.msra.mxu0 0
        %1217 = vmatprep.subr.bf16.mxu0 0
        %1218 = vmatpush1.bf16.msra.mxu0 0
        %1219 = vmatprep.subr.bf16.mxu0 0
        %1220 = vmatpush1.bf16.msra.mxu0 0
        %1221 = vmatprep.subr.bf16.mxu0 0
        %1222 = vmatpush1.bf16.msra.mxu0 0
        %1223 = vmatprep.subr.bf16.mxu0 0
        %1224 = vmatpush1.bf16.msra.mxu0 0
        %1225 = vmatprep.subr.bf16.mxu0 0
        %1226 = vmatpush1.bf16.msra.mxu0 0
        %1227 = vmatprep.subr.bf16.mxu0 0
        %1228 = vmatpush1.bf16.msra.mxu0 0
        %1229 = vmatprep.mubr.bf16.mxu0 0
        %1230 = vmatmul.mubr.bf16.gmra.mrb[0].mxu0 %v1191
        %v1231 = vpop.f32.mrb[0].mxu0
        %v1232 = vadd.f32 0.0, %v1231
        %v1233 = vpop.f32.mrb[0].mxu0
        %v1234 = vpop.f32.mrb[0].mxu0
        %v1235 = vpop.f32.mrb[0].mxu0
        %1236 = vdwg.mxu0
        %1238 = vrot.lane.b32.xlu0 %v1128, 120
        %v1239 = vpop.permute.xlu0 %1238
        %1241 = vrot.lane.b32.xlu0 %v1129, 120
        %v1242 = vpop.permute.xlu0 %1241
        %v1244 = vsel %vm1131, %v1239, 0
        %v1247 = vsel %vm1131, %v1242, 0
        %1249 = vmatprep.subr.bf16.mxu0 0
        %1250 = vmatpush1.bf16.xpose.msra.mxu0 %v1247
        %1251 = vmatprep.subr.bf16.mxu0 0
        %1252 = vmatpush1.bf16.xpose.msra.mxu0 0
        %1253 = vmatprep.subr.bf16.mxu0 0
        %1254 = vmatpush1.bf16.xpose.msra.mxu0 0
        %1255 = vmatprep.subr.bf16.mxu0 0
        %1256 = vmatpush1.bf16.xpose.msra.mxu0 0
        %1257 = vmatprep.subr.bf16.mxu0 0
        %1258 = vmatpush1.bf16.xpose.msra.mxu0 0
        %1259 = vmatprep.subr.bf16.mxu0 0
        %1260 = vmatpush1.bf16.xpose.msra.mxu0 0
        %1261 = vmatprep.subr.bf16.mxu0 0
        %1262 = vmatpush1.bf16.xpose.msra.mxu0 0
        %1263 = vmatprep.subr.bf16.mxu0 0
        %1264 = vmatpush1.bf16.xpose.msra.mxu0 0
        %1265 = vmatprep.subr.bf16.mxu0 0
        %1266 = vmatpush1.bf16.xpose.msra.mxu0 0
        %1267 = vmatprep.subr.bf16.mxu0 0
        %1268 = vmatpush1.bf16.xpose.msra.mxu0 0
        %1269 = vmatprep.subr.bf16.mxu0 0
        %1270 = vmatpush1.bf16.xpose.msra.mxu0 0
        %1271 = vmatprep.subr.bf16.mxu0 0
        %1272 = vmatpush1.bf16.xpose.msra.mxu0 0
        %1273 = vmatprep.subr.bf16.mxu0 0
        %1274 = vmatpush1.bf16.xpose.msra.mxu0 0
        %1275 = vmatprep.subr.bf16.mxu0 0
        %1276 = vmatpush1.bf16.xpose.msra.mxu0 0
        %1277 = vmatprep.subr.bf16.mxu0 0
        %1278 = vmatpush1.bf16.xpose.msra.mxu0 0
        %1279 = vmatprep.subr.bf16.mxu0 0
        %1280 = vmatpush1.bf16.xpose.msra.mxu0 0
        %1281 = vmatprep.mubr.bf16.mxu0 0
        %1282 = vmatmul.mubr.bf16.gmra.mrb[0].mxu0 %v1244
        %v1283 = vpop.f32.mrb[0].mxu0
        %v1284 = vadd.f32 0.0, %v1283
        %v1285 = vpop.f32.mrb[0].mxu0
        %v1286 = vpop.f32.mrb[0].mxu0
        %v1287 = vpop.f32.mrb[0].mxu0
        %1288 = vdwg.mxu0
        %v1289 = vsel %vm1131, %v1284, -inf
        %1290 = vmax.xlane.f32.xlu0 %v1289
        %v1291 = vpop.xlane.xlu0 %1290
        %v1292 = vsub.f32 %v1284, %v1291
        %v1293 = vmul.f32 %v1292, 1.442695
        %v1294 = vpow.pop %v1293
        %v1295 = vsel %vm1131, %v1294, 0.0
        %1296 = vadd.xlane.f32.xlu0 %v1295
        %v1297 = vpop.xlane.xlu0 %1296
        %v1298 = vrcp.pop %v1297
        %v1299 = vmul.f32 %v1294, %v1298
        %v1300 = vpack.c.bf16 %v1299, %v1299
        %1302 = vrot.lane.b32.xlu0 %v1130, 120
        %v1303 = vpop.permute.xlu0 %1302
        %v1305 = vsel %vm1131, %v1300, 0
        %v1308 = vsel %vm1193, %v1303, 0
        %1310 = vmatprep.subr.bf16.mxu0 0
        %1311 = vmatpush1.bf16.msra.mxu0 %v1308
        %1312 = vmatprep.subr.bf16.mxu0 0
        %1313 = vmatpush1.bf16.msra.mxu0 0
        %1314 = vmatprep.subr.bf16.mxu0 0
        %1315 = vmatpush1.bf16.msra.mxu0 0
        %1316 = vmatprep.subr.bf16.mxu0 0
        %1317 = vmatpush1.bf16.msra.mxu0 0
        %1318 = vmatprep.subr.bf16.mxu0 0
        %1319 = vmatpush1.bf16.msra.mxu0 0
        %1320 = vmatprep.subr.bf16.mxu0 0
        %1321 = vmatpush1.bf16.msra.mxu0 0
        %1322 = vmatprep.subr.bf16.mxu0 0
        %1323 = vmatpush1.bf16.msra.mxu0 0
        %1324 = vmatprep.subr.bf16.mxu0 0
        %1325 = vmatpush1.bf16.msra.mxu0 0
        %1326 = vmatprep.subr.bf16.mxu0 0
        %1327 = vmatpush1.bf16.msra.mxu0 0
        %1328 = vmatprep.subr.bf16.mxu0 0
        %1329 = vmatpush1.bf16.msra.mxu0 0
        %1330 = vmatprep.subr.bf16.mxu0 0
        %1331 = vmatpush1.bf16.msra.mxu0 0
        %1332 = vmatprep.subr.bf16.mxu0 0
        %1333 = vmatpush1.bf16.msra.mxu0 0
        %1334 = vmatprep.subr.bf16.mxu0 0
        %1335 = vmatpush1.bf16.msra.mxu0 0
        %1336 = vmatprep.subr.bf16.mxu0 0
        %1337 = vmatpush1.bf16.msra.mxu0 0
        %1338 = vmatprep.subr.bf16.mxu0 0
        %1339 = vmatpush1.bf16.msra.mxu0 0
        %1340 = vmatprep.subr.bf16.mxu0 0
        %1341 = vmatpush1.bf16.msra.mxu0 0
        %1342 = vmatprep.mubr.bf16.mxu0 0
        %1343 = vmatmul.mubr.bf16.gmra.mrb[0].mxu0 %v1305
        %v1344 = vpop.f32.mrb[0].mxu0
        %v1345 = vadd.f32 0.0, %v1344
        %v1346 = vpop.f32.mrb[0].mxu0
        %v1347 = vpop.f32.mrb[0].mxu0
        %v1348 = vpop.f32.mrb[0].mxu0
        %1349 = vdwg.mxu0
        %1350 = vrot.lane.b32.xlu0 %v1128, 112
        %v1351 = vpop.permute.xlu0 %1350
        %1352 = vrot.lane.b32.xlu0 %v1129, 112
        %v1353 = vpop.permute.xlu0 %1352
        %v1355 = vsel %vm1131, %v1351, 0
        %v1358 = vsel %vm1131, %v1353, 0
        %1360 = vmatprep.subr.bf16.mxu0 0
        %1361 = vmatpush1.bf16.xpose.msra.mxu0 %v1358
        %1362 = vmatprep.subr.bf16.mxu0 0
        %1363 = vmatpush1.bf16.xpose.msra.mxu0 0
        %1364 = vmatprep.subr.bf16.mxu0 0
        %1365 = vmatpush1.bf16.xpose.msra.mxu0 0
        %1366 = vmatprep.subr.bf16.mxu0 0
        %1367 = vmatpush1.bf16.xpose.msra.mxu0 0
        %1368 = vmatprep.subr.bf16.mxu0 0
        %1369 = vmatpush1.bf16.xpose.msra.mxu0 0
        %1370 = vmatprep.subr.bf16.mxu0 0
        %1371 = vmatpush1.bf16.xpose.msra.mxu0 0
        %1372 = vmatprep.subr.bf16.mxu0 0
        %1373 = vmatpush1.bf16.xpose.msra.mxu0 0
        %1374 = vmatprep.subr.bf16.mxu0 0
        %1375 = vmatpush1.bf16.xpose.msra.mxu0 0
        %1376 = vmatprep.subr.bf16.mxu0 0
        %1377 = vmatpush1.bf16.xpose.msra.mxu0 0
        %1378 = vmatprep.subr.bf16.mxu0 0
        %1379 = vmatpush1.bf16.xpose.msra.mxu0 0
        %1380 = vmatprep.subr.bf16.mxu0 0
        %1381 = vmatpush1.bf16.xpose.msra.mxu0 0
        %1382 = vmatprep.subr.bf16.mxu0 0
        %1383 = vmatpush1.bf16.xpose.msra.mxu0 0
        %1384 = vmatprep.subr.bf16.mxu0 0
        %1385 = vmatpush1.bf16.xpose.msra.mxu0 0
        %1386 = vmatprep.subr.bf16.mxu0 0
        %1387 = vmatpush1.bf16.xpose.msra.mxu0 0
        %1388 = vmatprep.subr.bf16.mxu0 0
        %1389 = vmatpush1.bf16.xpose.msra.mxu0 0
        %1390 = vmatprep.subr.bf16.mxu0 0
        %1391 = vmatpush1.bf16.xpose.msra.mxu0 0
        %1392 = vmatprep.mubr.bf16.mxu0 0
        %1393 = vmatmul.mubr.bf16.gmra.mrb[0].mxu0 %v1355
        %v1394 = vpop.f32.mrb[0].mxu0
        %v1395 = vadd.f32 0.0, %v1394
        %v1396 = vpop.f32.mrb[0].mxu0
        %v1397 = vpop.f32.mrb[0].mxu0
        %v1398 = vpop.f32.mrb[0].mxu0
        %1399 = vdwg.mxu0
        %v1400 = vsel %vm1131, %v1395, -inf
        %1401 = vmax.xlane.f32.xlu0 %v1400
        %v1402 = vpop.xlane.xlu0 %1401
        %v1403 = vsub.f32 %v1395, %v1402
        %v1404 = vmul.f32 %v1403, 1.442695
        %v1405 = vpow.pop %v1404
        %v1406 = vsel %vm1131, %v1405, 0.0
        %1407 = vadd.xlane.f32.xlu0 %v1406
        %v1408 = vpop.xlane.xlu0 %1407
        %v1409 = vrcp.pop %v1408
        %v1410 = vmul.f32 %v1405, %v1409
        %v1411 = vpack.c.bf16 %v1410, %v1410
        %1412 = vrot.lane.b32.xlu0 %v1130, 112
        %v1413 = vpop.permute.xlu0 %1412
        %v1415 = vsel %vm1131, %v1411, 0
        %v1418 = vsel %vm1193, %v1413, 0
        %1420 = vmatprep.subr.bf16.mxu0 0
        %1421 = vmatpush1.bf16.msra.mxu0 %v1418
        %1422 = vmatprep.subr.bf16.mxu0 0
        %1423 = vmatpush1.bf16.msra.mxu0 0
        %1424 = vmatprep.subr.bf16.mxu0 0
        %1425 = vmatpush1.bf16.msra.mxu0 0
        %1426 = vmatprep.subr.bf16.mxu0 0
        %1427 = vmatpush1.bf16.msra.mxu0 0
        %1428 = vmatprep.subr.bf16.mxu0 0
        %1429 = vmatpush1.bf16.msra.mxu0 0
        %1430 = vmatprep.subr.bf16.mxu0 0
        %1431 = vmatpush1.bf16.msra.mxu0 0
        %1432 = vmatprep.subr.bf16.mxu0 0
        %1433 = vmatpush1.bf16.msra.mxu0 0
        %1434 = vmatprep.subr.bf16.mxu0 0
        %1435 = vmatpush1.bf16.msra.mxu0 0
        %1436 = vmatprep.subr.bf16.mxu0 0
        %1437 = vmatpush1.bf16.msra.mxu0 0
        %1438 = vmatprep.subr.bf16.mxu0 0
        %1439 = vmatpush1.bf16.msra.mxu0 0
        %1440 = vmatprep.subr.bf16.mxu0 0
        %1441 = vmatpush1.bf16.msra.mxu0 0
        %1442 = vmatprep.subr.bf16.mxu0 0
        %1443 = vmatpush1.bf16.msra.mxu0 0
        %1444 = vmatprep.subr.bf16.mxu0 0
        %1445 = vmatpush1.bf16.msra.mxu0 0
        %1446 = vmatprep.subr.bf16.mxu0 0
        %1447 = vmatpush1.bf16.msra.mxu0 0
        %1448 = vmatprep.subr.bf16.mxu0 0
        %1449 = vmatpush1.bf16.msra.mxu0 0
        %1450 = vmatprep.subr.bf16.mxu0 0
        %1451 = vmatpush1.bf16.msra.mxu0 0
        %1452 = vmatprep.mubr.bf16.mxu0 0
        %1453 = vmatmul.mubr.bf16.gmra.mrb[0].mxu0 %v1415
        %v1454 = vpop.f32.mrb[0].mxu0
        %v1455 = vadd.f32 0.0, %v1454
        %v1456 = vpop.f32.mrb[0].mxu0
        %v1457 = vpop.f32.mrb[0].mxu0
        %v1458 = vpop.f32.mrb[0].mxu0
        %1459 = vdwg.mxu0
        %1460 = vrot.lane.b32.xlu0 %v1128, 104
        %v1461 = vpop.permute.xlu0 %1460
        %1462 = vrot.lane.b32.xlu0 %v1129, 104
        %v1463 = vpop.permute.xlu0 %1462
        %v1465 = vsel %vm1131, %v1461, 0
        %v1468 = vsel %vm1131, %v1463, 0
        %1470 = vmatprep.subr.bf16.mxu0 0
        %1471 = vmatpush1.bf16.xpose.msra.mxu0 %v1468
        %1472 = vmatprep.subr.bf16.mxu0 0
        %1473 = vmatpush1.bf16.xpose.msra.mxu0 0
        %1474 = vmatprep.subr.bf16.mxu0 0
        %1475 = vmatpush1.bf16.xpose.msra.mxu0 0
        %1476 = vmatprep.subr.bf16.mxu0 0
        %1477 = vmatpush1.bf16.xpose.msra.mxu0 0
        %1478 = vmatprep.subr.bf16.mxu0 0
        %1479 = vmatpush1.bf16.xpose.msra.mxu0 0
        %1480 = vmatprep.subr.bf16.mxu0 0
        %1481 = vmatpush1.bf16.xpose.msra.mxu0 0
        %1482 = vmatprep.subr.bf16.mxu0 0
        %1483 = vmatpush1.bf16.xpose.msra.mxu0 0
        %1484 = vmatprep.subr.bf16.mxu0 0
        %1485 = vmatpush1.bf16.xpose.msra.mxu0 0
        %1486 = vmatprep.subr.bf16.mxu0 0
        %1487 = vmatpush1.bf16.xpose.msra.mxu0 0
        %1488 = vmatprep.subr.bf16.mxu0 0
        %1489 = vmatpush1.bf16.xpose.msra.mxu0 0
        %1490 = vmatprep.subr.bf16.mxu0 0
        %1491 = vmatpush1.bf16.xpose.msra.mxu0 0
        %1492 = vmatprep.subr.bf16.mxu0 0
        %1493 = vmatpush1.bf16.xpose.msra.mxu0 0
        %1494 = vmatprep.subr.bf16.mxu0 0
        %1495 = vmatpush1.bf16.xpose.msra.mxu0 0
        %1496 = vmatprep.subr.bf16.mxu0 0
        %1497 = vmatpush1.bf16.xpose.msra.mxu0 0
        %1498 = vmatprep.subr.bf16.mxu0 0
        %1499 = vmatpush1.bf16.xpose.msra.mxu0 0
        %1500 = vmatprep.subr.bf16.mxu0 0
        %1501 = vmatpush1.bf16.xpose.msra.mxu0 0
        %1502 = vmatprep.mubr.bf16.mxu0 0
        %1503 = vmatmul.mubr.bf16.gmra.mrb[0].mxu0 %v1465
        %v1504 = vpop.f32.mrb[0].mxu0
        %v1505 = vadd.f32 0.0, %v1504
        %v1506 = vpop.f32.mrb[0].mxu0
        %v1507 = vpop.f32.mrb[0].mxu0
        %v1508 = vpop.f32.mrb[0].mxu0
        %1509 = vdwg.mxu0
        %v1510 = vsel %vm1131, %v1505, -inf
        %1511 = vmax.xlane.f32.xlu0 %v1510
        %v1512 = vpop.xlane.xlu0 %1511
        %v1513 = vsub.f32 %v1505, %v1512
        %v1514 = vmul.f32 %v1513, 1.442695
        %v1515 = vpow.pop %v1514
        %v1516 = vsel %vm1131, %v1515, 0.0
        %1517 = vadd.xlane.f32.xlu0 %v1516
        %v1518 = vpop.xlane.xlu0 %1517
        %v1519 = vrcp.pop %v1518
        %v1520 = vmul.f32 %v1515, %v1519
        %v1521 = vpack.c.bf16 %v1520, %v1520
        %1522 = vrot.lane.b32.xlu0 %v1130, 104
        %v1523 = vpop.permute.xlu0 %1522
        %v1525 = vsel %vm1131, %v1521, 0
        %v1528 = vsel %vm1193, %v1523, 0
        %1530 = vmatprep.subr.bf16.mxu0 0
        %1531 = vmatpush1.bf16.msra.mxu0 %v1528
        %1532 = vmatprep.subr.bf16.mxu0 0
        %1533 = vmatpush1.bf16.msra.mxu0 0
        %1534 = vmatprep.subr.bf16.mxu0 0
        %1535 = vmatpush1.bf16.msra.mxu0 0
        %1536 = vmatprep.subr.bf16.mxu0 0
        %1537 = vmatpush1.bf16.msra.mxu0 0
        %1538 = vmatprep.subr.bf16.mxu0 0
        %1539 = vmatpush1.bf16.msra.mxu0 0
        %1540 = vmatprep.subr.bf16.mxu0 0
        %1541 = vmatpush1.bf16.msra.mxu0 0
        %1542 = vmatprep.subr.bf16.mxu0 0
        %1543 = vmatpush1.bf16.msra.mxu0 0
        %1544 = vmatprep.subr.bf16.mxu0 0
        %1545 = vmatpush1.bf16.msra.mxu0 0
        %1546 = vmatprep.subr.bf16.mxu0 0
        %1547 = vmatpush1.bf16.msra.mxu0 0
        %1548 = vmatprep.subr.bf16.mxu0 0
        %1549 = vmatpush1.bf16.msra.mxu0 0
        %1550 = vmatprep.subr.bf16.mxu0 0
        %1551 = vmatpush1.bf16.msra.mxu0 0
        %1552 = vmatprep.subr.bf16.mxu0 0
        %1553 = vmatpush1.bf16.msra.mxu0 0
        %1554 = vmatprep.subr.bf16.mxu0 0
        %1555 = vmatpush1.bf16.msra.mxu0 0
        %1556 = vmatprep.subr.bf16.mxu0 0
        %1557 = vmatpush1.bf16.msra.mxu0 0
        %1558 = vmatprep.subr.bf16.mxu0 0
        %1559 = vmatpush1.bf16.msra.mxu0 0
        %1560 = vmatprep.subr.bf16.mxu0 0
        %1561 = vmatpush1.bf16.msra.mxu0 0
        %1562 = vmatprep.mubr.bf16.mxu0 0
        %1563 = vmatmul.mubr.bf16.gmra.mrb[0].mxu0 %v1525
        %v1564 = vpop.f32.mrb[0].mxu0
        %v1565 = vadd.f32 0.0, %v1564
        %v1566 = vpop.f32.mrb[0].mxu0
        %v1567 = vpop.f32.mrb[0].mxu0
        %v1568 = vpop.f32.mrb[0].mxu0
        %1569 = vdwg.mxu0
        %1571 = vrot.lane.b32.xlu0 %v1345, 8
        %v1572 = vpop.permute.xlu0 %1571
        %1575 = vrot.lane.b32.xlu0 %v1455, 16
        %v1576 = vpop.permute.xlu0 %1575
        %1579 = vrot.lane.b32.xlu0 %v1565, 24
        %v1580 = vpop.permute.xlu0 %1579
        %v1582 = vsel %vm1131, %v1232, %v1572
        %vm1583 = vcmask 130048
        %v1584 = vsel %vm1583, %v1582, %v1576
        %vm1585 = vcmask 195584
        %v1586 = vsel %vm1585, %v1584, %v1580
        %v1587 = vadd.f32 %v862, %v1586
        %v1588 = vld [vmem:[%s834] sm:$0x1]
        %v1589 = vld [vmem:[%s837] sm:$0x1]
        %v1590 = vsel %vm866, %v1587, 0.0
        %1591 = vadd.xlane.f32.xlu0 %v1590
        %v1592 = vpop.xlane.xlu0 %1591
        %v1593 = vmul.f32 %v1592, %v870
        %v1594 = vmul.f32 %v1587, %v1587
        %v1595 = vsel %vm866, %v1594, 0.0
        %1596 = vadd.xlane.f32.xlu0 %v1595
        %v1597 = vpop.xlane.xlu0 %1596
        %v1598 = vmul.f32 %v1597, %v870
        %v1599 = vmul.f32 %v1593, %v1593
        %v1600 = vsub.f32 %v1598, %v1599
        %v1601 = vmax.f32 %v1600, 0.0
        %v1602 = vsub.f32 %v1587, %v1593
        %v1603 = vadd.f32 %v1601, 1e-05
        %v1604 = vrsqrt.pop %v1603
        %v1605 = vmul.f32 %v1602, %v1604
        %v1607 = vlaneseq
        %v1608 = vshrl.u32 %v1607, 7
        %v1609 = vsub.s32 0, %v1608
        %v1610 = vrot.slane %v1588, %v1609
        %v1612 = vmul.f32 %v1605, %v1610
        %v1614 = vlaneseq
        %v1615 = vshrl.u32 %v1614, 7
        %v1616 = vsub.s32 0, %v1615
        %v1617 = vrot.slane %v1589, %v1616
        %v1619 = vadd.f32 %v1612, %v1617
        %v1620 = vpack.c.bf16 %v1619, %v1619
        %v1621 = vld [vmem:[%s842] sm:$0xf]
        %v1622 = vld [vmem:[%s842 + $0x4] sm:$0xf]
        %v1623 = vld [vmem:[%s842 + $0x8] sm:$0xf]
        %v1624 = vld [vmem:[%s842 + $0xc] sm:$0xf]
        %v1625 = vld [vmem:[%s845] sm:$0x1]
        %v1627 = vlaneseq
        %v1628 = vshrl.u32 %v1627, 7
        %v1629 = vsub.s32 0, %v1628
        %v1630 = vrot.slane %v1625, %v1629
        %v1636 = vunpack.c.l.b16 %v1621
        %v1637 = vunpack.c.l.b16 %v1622
        %v1638 = vunpack.c.l.b16 %v1623
        %v1639 = vunpack.c.l.b16 %v1624
        %v1640 = vpack.c.b16 %v1637, %v1636
        %v1641 = vpack.c.b16 %v1639, %v1638
        %v1645 = vsel %vm866, %v1620, 0
        %1647 = vmatprep.subr.bf16.mxu0 0
        %1648 = vmatpush1.bf16.msra.mxu0 %v1640
        %1649 = vmatprep.subr.bf16.mxu0 0
        %1650 = vmatpush1.bf16.msra.mxu0 %v1641
        %1651 = vmatprep.subr.bf16.mxu0 0
        %1652 = vmatpush1.bf16.msra.mxu0 0
        %1653 = vmatprep.subr.bf16.mxu0 0
        %1654 = vmatpush1.bf16.msra.mxu0 0
        %1655 = vmatprep.subr.bf16.mxu0 0
        %1656 = vmatpush1.bf16.msra.mxu0 0
        %1657 = vmatprep.subr.bf16.mxu0 0
        %1658 = vmatpush1.bf16.msra.mxu0 0
        %1659 = vmatprep.subr.bf16.mxu0 0
        %1660 = vmatpush1.bf16.msra.mxu0 0
        %1661 = vmatprep.subr.bf16.mxu0 0
        %1662 = vmatpush1.bf16.msra.mxu0 0
        %1663 = vmatprep.subr.bf16.mxu0 0
        %1664 = vmatpush1.bf16.msra.mxu0 0
        %1665 = vmatprep.subr.bf16.mxu0 0
        %1666 = vmatpush1.bf16.msra.mxu0 0
        %1667 = vmatprep.subr.bf16.mxu0 0
        %1668 = vmatpush1.bf16.msra.mxu0 0
        %1669 = vmatprep.subr.bf16.mxu0 0
        %1670 = vmatpush1.bf16.msra.mxu0 0
        %1671 = vmatprep.subr.bf16.mxu0 0
        %1672 = vmatpush1.bf16.msra.mxu0 0
        %1673 = vmatprep.subr.bf16.mxu0 0
        %1674 = vmatpush1.bf16.msra.mxu0 0
        %1675 = vmatprep.subr.bf16.mxu0 0
        %1676 = vmatpush1.bf16.msra.mxu0 0
        %1677 = vmatprep.subr.bf16.mxu0 0
        %1678 = vmatpush1.bf16.msra.mxu0 0
        %1679 = vmatprep.mubr.bf16.mxu0 0
        %1680 = vmatmul.mubr.bf16.gmra.mrb[0].mxu0 %v1645
        %v1681 = vpop.f32.mrb[0].mxu0
        %v1682 = vadd.f32 %v1630, %v1681
        %v1683 = vpop.f32.mrb[0].mxu0
        %v1684 = vpop.f32.mrb[0].mxu0
        %v1685 = vpop.f32.mrb[0].mxu0
        %1686 = vdwg.mxu0
        %v1687 = vmul.f32 %v1682, -1.702
        %v1688 = vmul.f32 %v1687, 1.442695
        %v1689 = vpow.pop %v1688
        %v1690 = vadd.f32 %v1689, 1.0
        %v1691 = vrcp.pop %v1690
        %v1692 = vmul.f32 1.0, %v1691
        %v1693 = vmul.f32 %v1682, %v1692
        %v1694 = vpack.c.bf16 %v1693, %v1693
        %v1695 = vld [vmem:[%s850] sm:$0xf]
        %v1696 = vld [vmem:[%s850 + $0x4] sm:$0xf]
        %v1697 = vld [vmem:[%s850 + $0x8] sm:$0xf]
        %v1698 = vld [vmem:[%s850 + $0xc] sm:$0xf]
        %v1699 = vld [vmem:[%s850 + $0x10] sm:$0xf]
        %v1700 = vld [vmem:[%s850 + $0x14] sm:$0xf]
        %v1701 = vld [vmem:[%s850 + $0x18] sm:$0xf]
        %v1702 = vld [vmem:[%s850 + $0x1c] sm:$0xf]
        %v1703 = vld [vmem:[%s850 + $0x20] sm:$0xf]
        %v1704 = vld [vmem:[%s850 + $0x24] sm:$0xf]
        %v1705 = vld [vmem:[%s850 + $0x28] sm:$0xf]
        %v1706 = vld [vmem:[%s850 + $0x2c] sm:$0xf]
        %v1707 = vld [vmem:[%s850 + $0x30] sm:$0xf]
        %v1708 = vld [vmem:[%s850 + $0x34] sm:$0xf]
        %v1709 = vld [vmem:[%s850 + $0x38] sm:$0xf]
        %v1710 = vld [vmem:[%s850 + $0x3c] sm:$0xf]
        %v1711 = vld [vmem:[%s853] sm:$0x1]
        %v1713 = vlaneseq
        %v1714 = vshrl.u32 %v1713, 7
        %v1715 = vsub.s32 0, %v1714
        %v1716 = vrot.slane %v1711, %v1715
        %v1734 = vunpack.c.l.b16 %v1695
        %v1735 = vunpack.c.l.b16 %v1696
        %v1736 = vunpack.c.l.b16 %v1697
        %v1737 = vunpack.c.l.b16 %v1698
        %v1738 = vunpack.c.l.b16 %v1699
        %v1739 = vunpack.c.l.b16 %v1700
        %v1740 = vunpack.c.l.b16 %v1701
        %v1741 = vunpack.c.l.b16 %v1702
        %v1742 = vunpack.c.l.b16 %v1703
        %v1743 = vunpack.c.l.b16 %v1704
        %v1744 = vunpack.c.l.b16 %v1705
        %v1745 = vunpack.c.l.b16 %v1706
        %v1746 = vunpack.c.l.b16 %v1707
        %v1747 = vunpack.c.l.b16 %v1708
        %v1748 = vunpack.c.l.b16 %v1709
        %v1749 = vunpack.c.l.b16 %v1710
        %v1750 = vpack.c.b16 %v1735, %v1734
        %v1751 = vpack.c.b16 %v1737, %v1736
        %v1752 = vpack.c.b16 %v1739, %v1738
        %v1753 = vpack.c.b16 %v1741, %v1740
        %v1754 = vpack.c.b16 %v1743, %v1742
        %v1755 = vpack.c.b16 %v1745, %v1744
        %v1756 = vpack.c.b16 %v1747, %v1746
        %v1757 = vpack.c.b16 %v1749, %v1748
        %1766 = vmatprep.subr.bf16.mxu0 0
        %1767 = vmatpush1.bf16.msra.mxu0 %v1750
        %1768 = vmatprep.subr.bf16.mxu0 0
        %1769 = vmatpush1.bf16.msra.mxu0 %v1751
        %1770 = vmatprep.subr.bf16.mxu0 0
        %1771 = vmatpush1.bf16.msra.mxu0 %v1752
        %1772 = vmatprep.subr.bf16.mxu0 0
        %1773 = vmatpush1.bf16.msra.mxu0 %v1753
        %1774 = vmatprep.subr.bf16.mxu0 0
        %1775 = vmatpush1.bf16.msra.mxu0 %v1754
        %1776 = vmatprep.subr.bf16.mxu0 0
        %1777 = vmatpush1.bf16.msra.mxu0 %v1755
        %1778 = vmatprep.subr.bf16.mxu0 0
        %1779 = vmatpush1.bf16.msra.mxu0 %v1756
        %1780 = vmatprep.subr.bf16.mxu0 0
        %1781 = vmatpush1.bf16.msra.mxu0 %v1757
        %1782 = vmatprep.subr.bf16.mxu0 0
        %1783 = vmatpush1.bf16.msra.mxu0 0
        %1784 = vmatprep.subr.bf16.mxu0 0
        %1785 = vmatpush1.bf16.msra.mxu0 0
        %1786 = vmatprep.subr.bf16.mxu0 0
        %1787 = vmatpush1.bf16.msra.mxu0 0
        %1788 = vmatprep.subr.bf16.mxu0 0
        %1789 = vmatpush1.bf16.msra.mxu0 0
        %1790 = vmatprep.subr.bf16.mxu0 0
        %1791 = vmatpush1.bf16.msra.mxu0 0
        %1792 = vmatprep.subr.bf16.mxu0 0
        %1793 = vmatpush1.bf16.msra.mxu0 0
        %1794 = vmatprep.subr.bf16.mxu0 0
        %1795 = vmatpush1.bf16.msra.mxu0 0
        %1796 = vmatprep.subr.bf16.mxu0 0
        %1797 = vmatpush1.bf16.msra.mxu0 0
        %1798 = vmatprep.mubr.bf16.mxu0 0
        %1799 = vmatmul.mubr.bf16.gmra.mrb[0].mxu0 %v1694
        %v1800 = vpop.f32.mrb[0].mxu0
        %v1801 = vadd.f32 %v1716, %v1800
        %v1802 = vpop.f32.mrb[0].mxu0
        %v1803 = vpop.f32.mrb[0].mxu0
        %v1804 = vpop.f32.mrb[0].mxu0
        %1805 = vdwg.mxu0
        %v1806 = vadd.f32 %v1587, %v1801
        %1807 = vst.msk [vmem:[#allocation2] sm:$0xff] %vm866, %v1806
        %p1808 = scmp.eq.s32.totalorder %s37, 1
        // Predicated region
        $region97: #{tpu_custom_call.1} parent=91 // pred_check
          %p1809 = pneg %p1808
        $region98: #{tpu_custom_call.1} parent=91 // pred_check_branch
          %1811 = sbr.rel (%p1809) target = $region100
        $region99: #{tpu_custom_call.1} parent=91 // pred_region
          %1812 = vst.msk [vmem:[%s787] sm:$0xff] %vm866, %v1806
        $region100: #{tpu_custom_call.1} parent=91 // pred_fallthru
          _
        %s1813 = sand.u32 %s520, 1
        %s1814 = scalar_lea.sflag [#allocation4], %s1813
        %s1815 = sand.u32 %s520, 1
        %s1816 = smul.addr %s1815, 8
        %s1817 = scalar_lea.vmem [#allocation3], %s1816
        // Predicated region
        $region101: #{tpu_custom_call.1} parent=91 // pred_check
          %p1818 = pneg %p530
        $region102: #{tpu_custom_call.1} parent=91 // pred_check_branch
          %1820 = sbr.rel (%p1818) target = $region104
        $region103: #{tpu_custom_call.1} parent=91 // pred_region
          %s1822 = ssub.s32 128, 128
          %1823 = vsyncadd %s1814, %s1822
          %s1824 = smul.addr %s36, 128
          %s1825 = scalar_lea.hbm %s18, %s1824
          %s1827 = sshll.u32 %s1817, 4
          %s1828 = int_to_ptr.vmem [resolvable:$true] %s1827
          %1830 = dma.vmem_to_hbm [thread:$0]  %s1828, 128, %s1825, %s1814
        $region104: #{tpu_custom_call.1} parent=91 // pred_fallthru
          _
      $region92: #{tpu_custom_call.1} parent=5 // pred_fallthru
        _
      %p1831 = scmp.le.s32.totalorder 2, %s27
      // Predicated region
      $region105: #{tpu_custom_call.1} parent=5 // pred_check
        %p1832 = pneg %p1831
      $region106: #{tpu_custom_call.1} parent=5 // pred_check_branch
        %1834 = sbr.rel (%p1832) target = $region108
      $region107: #{tpu_custom_call.1} parent=5 // pred_region
        %s1835 = ssub.s32 %s27, 2
        // Predicated region
        $region109: #{tpu_custom_call.1} parent=107 // pred_check
          %p1836 = pneg %p536
        $region110: #{tpu_custom_call.1} parent=107 // pred_check_branch
          %1838 = sbr.rel (%p1836) target = $region112
        $region111: #{tpu_custom_call.1} parent=107 // pred_region
          %s1839 = sand.u32 %s521, 1
          %s1840 = scalar_lea.sflag [#allocation4], %s1839
          %s1841 = sand.u32 %s521, 1
          %s1842 = smul.addr %s1841, 8
          %s1843 = scalar_lea.vmem [#allocation3], %s1842
          %1844 = dma.done %s1840, 128
        $region112: #{tpu_custom_call.1} parent=107 // pred_fallthru
          _
      $region108: #{tpu_custom_call.1} parent=5 // pred_fallthru
        _
    $region6: #{tpu_custom_call.1} parent=1 // loop_footer
      %s31 = sadd.s32 1, %s27
    $region7: #{tpu_custom_call.1} parent=1 // loop_footer_branch
      %26 = sbr.rel target = $region3
    $region8: #{tpu_custom_call.1} parent=1 // loop_exit
      _
    %1845 = vsyncpa [#allocation4], 1
    %s1846 = scalar_lea.sflag [#allocation4], 1
    %1847 = vsyncpa %s1846, 1

</llo_original>
